<compile_context>
chip_gen: v7x
topology: tpu7x:2x2x1
jax: 0.10.0
libtpu: 0.0.40
codegen_flags: <defaults>
</compile_context>

<pallas_src>
import math

import jax
import jax.numpy as jnp
from jax.experimental import pallas as pl
from jax.experimental.pallas import tpu as pltpu

H1, H2 = 400, 300            # logical layer widths (PyTorch)
H1P, H2P = 512, 384          # zero-padded to multiples of 128 (lane dims)
TM = 256                     # batch columns per tile (lane axis)


def _critic_kernel(x_ref, w1t_ref, b1c_ref, w2t_ref, b2c_ref, w3c_ref, b3_ref,
                   o_ref):
    # Feature-major layout:
    #   x:   (D, TM)     bf16      (D = OBS_DIM + ACT_DIM, batch on lanes)
    #   w1t: (H1P, D)    bf16      b1c: (H1P, 1) f32
    #   w2t: (H2P, H1P)  bf16      b2c: (H2P, 1) f32
    #   w3c: (H2P, 1)    f32       b3:  (1, 1)   f32 scalar in SMEM
    #   o:   (1, TM)     f32       lane-dense output row
    h1 = jnp.dot(w1t_ref[...], x_ref[...],
                 preferred_element_type=jnp.float32) + b1c_ref[...]
    h1 = jnp.maximum(h1, 0.0)                                     # (H1P, TM) f32

    h2 = jnp.dot(w2t_ref[...], h1.astype(jnp.bfloat16),
                 preferred_element_type=jnp.float32) + b2c_ref[...]
    h2 = jnp.maximum(h2, 0.0)                                     # (H2P, TM) f32

    # Linear(300, 1): VPU multiply by the weight column + sublane reduce
    # (keeps the tiny N=1 work off the MXU and yields the (1, TM) row directly).
    y = jnp.sum(h2 * w3c_ref[...], axis=0, keepdims=True) + b3_ref[0, 0]
    o_ref[...] = jnp.tanh(y)                                      # (1, TM)


def critic_forward_batch(state, action, dev_params, tm=TM):
    """state: (B, OBS_DIM), action: (B, ACT_DIM)  ->  (B, 1) float32."""
    w1t, b1c, w2t, b2c, w3c, b3s = dev_params
    x = jnp.concatenate((state, action), axis=1)   # fuse layer-1's two matmuls
    B, D = x.shape

    # Tile size: big tiles to fill the MXU / amortize grid-step overhead, a tiny
    # 8-wide tile for single-sample calls, never much larger than the batch.
    if B <= 8:
        tm = 8
    else:
        tm = min(tm, pl.cdiv(B, 128) * 128)
    bp = pl.cdiv(B, tm) * tm

    # Feature-major bf16 input: batch on the lane axis (wrapper-side layout
    # plumbing; padded columns are sliced off below).
    xt = x.astype(jnp.bfloat16).T                  # (D, B)
    if bp != B:
        xt = jnp.pad(xt, ((0, 0), (0, bp - B)))

    out = pl.pallas_call(
        _critic_kernel,
        out_shape=jax.ShapeDtypeStruct((1, bp), jnp.float32),
        grid=(bp // tm,),
        in_specs=[
            pl.BlockSpec((D, tm), lambda i: (0, i)),
            # Weights/biases: constant block index -> fetched once per call and
            # VMEM-resident across all batch tiles.
            pl.BlockSpec((H1P, D), lambda i: (0, 0)),
            pl.BlockSpec((H1P, 1), lambda i: (0, 0)),
            pl.BlockSpec((H2P, H1P), lambda i: (0, 0)),
            pl.BlockSpec((H2P, 1), lambda i: (0, 0)),
            pl.BlockSpec((H2P, 1), lambda i: (0, 0)),
            pl.BlockSpec(memory_space=pltpu.MemorySpace.SMEM),   # b3 scalar
        ],
        out_specs=pl.BlockSpec((1, tm), lambda i: (0, i)),
        compiler_params=pltpu.CompilerParams(
            dimension_semantics=("parallel",)),    # v7x: 2 TCs split the tiles
    )(xt, w1t, b1c, w2t, b2c, w3c, b3s)

    return out[0, :B].reshape(B, 1)


def critic_forward(state, action, dev_params):
    """1-D state/action (PyTorch forward signature)  ->  (1,) float32."""
    out = critic_forward_batch(state[None, :], action[None, :], dev_params)
    return out.reshape((1,))


def init_critic_params(key, obs_dim, act_dim, bias=True):
    """Logical params mimicking nn.Linear defaults: U(-1/sqrt(fan_in), +)."""
    dims = [(obs_dim + act_dim, H1), (H1, H2), (H2, 1)]
    params = []
    for (fan_in, fan_out) in dims:
        key, kw, kb = jax.random.split(key, 3)
        bound = 1.0 / math.sqrt(fan_in)
        w = jax.random.uniform(kw, (fan_in, fan_out), jnp.float32, -bound, bound)
        if bias:
            b = jax.random.uniform(kb, (1, fan_out), jnp.float32, -bound, bound)
        else:
            b = jnp.zeros((1, fan_out), jnp.float32)
        params += [w, b]
    return tuple(params)


def prepare_device_params(params):
    """Transpose to feature-major, zero-pad 400->512 / 300->384, bf16 weights."""
    w1, b1, w2, b2, w3, b3 = params
    w1t = jnp.pad(w1, ((0, 0), (0, H1P - H1))).T.astype(jnp.bfloat16)        # (H1P, D)
    b1c = jnp.pad(b1, ((0, 0), (0, H1P - H1))).T.astype(jnp.float32)         # (H1P, 1)
    w2t = jnp.pad(w2, ((0, H1P - H1), (0, H2P - H2))).T.astype(jnp.bfloat16)  # (H2P, H1P)
    b2c = jnp.pad(b2, ((0, 0), (0, H2P - H2))).T.astype(jnp.float32)         # (H2P, 1)
    w3c = jnp.pad(w3, ((0, H2P - H2), (0, 0))).astype(jnp.float32)           # (H2P, 1)
    b3s = b3.reshape(1, 1).astype(jnp.float32)                               # (1, 1) SMEM
    return w1t, b1c, w2t, b2c, w3c, b3s


def _reference_forward_batch(state, action, params):
    w1, b1, w2, b2, w3, b3 = params
    x = jnp.concatenate((state, action), axis=1)
    h1 = jnp.maximum(x @ w1 + b1, 0.0)
    h2 = jnp.maximum(h1 @ w2 + b2, 0.0)
    return jnp.tanh(h2 @ w3 + b3)


if __name__ == "__main__":
    OBS_DIM, ACT_DIM = 24, 8   # concatenated input dim D = 32
    BATCH = 200                # non-multiple of the tile to exercise batch padding

    key = jax.random.PRNGKey(0)
    kp, ks, ka = jax.random.split(key, 3)
    params = init_critic_params(kp, OBS_DIM, ACT_DIM, bias=True)
    dev_params = prepare_device_params(params)

    states = jax.random.normal(ks, (BATCH, OBS_DIM), jnp.float32)
    actions = jax.random.normal(ka, (BATCH, ACT_DIM), jnp.float32)

    # Batched path (main perf path).  bf16 weights/inputs with f32 accumulation:
    # compare against the f32 reference with a bf16-appropriate tolerance.
    out_b = jax.block_until_ready(critic_forward_batch(states, actions, dev_params))
    ref_b = _reference_forward_batch(states, actions, params)
    assert out_b.shape == (BATCH, 1)
    assert jnp.allclose(out_b, ref_b, atol=5e-2, rtol=5e-2), (
        float(jnp.max(jnp.abs(out_b - ref_b))))

    # Single-sample path matching the original PyTorch forward signature
    # (uses the tiny 8-wide tile variant, not a full 256-row tile).
    out_1 = jax.block_until_ready(critic_forward(states[0], actions[0], dev_params))
    assert out_1.shape == (1,)
    assert jnp.allclose(out_1, ref_b[0], atol=5e-2, rtol=5e-2), (out_1, ref_b[0])

    print("KERNEL_OK")
</pallas_src>

<mosaic_0001>
module attributes {stable_mosaic.version = 11 : i64} {
  func.func @_critic_kernel(%arg0: i32, %arg1: memref<32x256xbf16, #tpu.memory_space<vmem>>, %arg2: memref<512x32xbf16, #tpu.memory_space<vmem>>, %arg3: memref<512x1xf32, #tpu.memory_space<vmem>>, %arg4: memref<384x512xbf16, #tpu.memory_space<vmem>>, %arg5: memref<384x1xf32, #tpu.memory_space<vmem>>, %arg6: memref<384x1xf32, #tpu.memory_space<vmem>>, %arg7: memref<1x1xf32, #tpu.memory_space<smem>>, %arg8: memref<1x256xf32, #tpu.memory_space<vmem>>) attributes {dimension_semantics = [#tpu.dimension_semantics<parallel>], iteration_bounds = array<i64: 1>, scalar_prefetch = 0 : i64, scratch_operands = 0 : i64, tpu.core_type = #tpu.core_type<tc>, window_params = [{transform_indices = @transform_0, window_bounds = array<i64: 32, 256>}, {pipeline_mode = #tpu.pipeline_mode<synchronous>, transform_indices = @transform_1, window_bounds = array<i64: 512, 32>}, {pipeline_mode = #tpu.pipeline_mode<synchronous>, transform_indices = @transform_2, window_bounds = array<i64: 512, 1>}, {pipeline_mode = #tpu.pipeline_mode<synchronous>, transform_indices = @transform_3, window_bounds = array<i64: 384, 512>}, {pipeline_mode = #tpu.pipeline_mode<synchronous>, transform_indices = @transform_4, window_bounds = array<i64: 384, 1>}, {pipeline_mode = #tpu.pipeline_mode<synchronous>, transform_indices = @transform_5, window_bounds = array<i64: 384, 1>}, {transform_indices = @transform_6, window_bounds = array<i64: 1, 1>}, {transform_indices = @transform_7, window_bounds = array<i64: 1, 256>}]} {
    %c0 = arith.constant 0 : index
    %c0_0 = arith.constant 0 : index
    %0 = vector.load %arg2[%c0, %c0_0] : memref<512x32xbf16, #tpu.memory_space<vmem>>, vector<512x32xbf16>
    %c0_1 = arith.constant 0 : index
    %c0_2 = arith.constant 0 : index
    %1 = vector.load %arg1[%c0_1, %c0_2] : memref<32x256xbf16, #tpu.memory_space<vmem>>, vector<32x256xbf16>
    %cst = arith.constant dense<0.000000e+00> : vector<512x256xf32>
    %2 = tpu.matmul %0, %1, %cst {dimension_numbers = #tpu.dot_dimension_numbers<[1], [0], [0], [1], [0, 0, 1, 1], [], []>} : vector<512x32xbf16>, vector<32x256xbf16>, vector<512x256xf32> -> vector<512x256xf32>
    %c0_3 = arith.constant 0 : index
    %c0_4 = arith.constant 0 : index
    %3 = vector.load %arg3[%c0_3, %c0_4] : memref<512x1xf32, #tpu.memory_space<vmem>>, vector<512x1xf32>
    %4 = vector.broadcast %3 : vector<512x1xf32> to vector<512x256xf32>
    %5 = arith.addf %2, %4 : vector<512x256xf32>
    %cst_5 = arith.constant 0.000000e+00 : f32
    %6 = vector.broadcast %cst_5 : f32 to vector<512x256xf32>
    %7 = arith.maximumf %5, %6 : vector<512x256xf32>
    %c0_6 = arith.constant 0 : index
    %c0_7 = arith.constant 0 : index
    %8 = vector.load %arg4[%c0_6, %c0_7] : memref<384x512xbf16, #tpu.memory_space<vmem>>, vector<384x512xbf16>
    %9 = arith.truncf %7 : vector<512x256xf32> to vector<512x256xbf16>
    %cst_8 = arith.constant dense<0.000000e+00> : vector<384x256xf32>
    %10 = tpu.matmul %8, %9, %cst_8 {dimension_numbers = #tpu.dot_dimension_numbers<[1], [0], [0], [1], [0, 0, 1, 1], [], []>} : vector<384x512xbf16>, vector<512x256xbf16>, vector<384x256xf32> -> vector<384x256xf32>
    %c0_9 = arith.constant 0 : index
    %c0_10 = arith.constant 0 : index
    %11 = vector.load %arg5[%c0_9, %c0_10] : memref<384x1xf32, #tpu.memory_space<vmem>>, vector<384x1xf32>
    %12 = vector.broadcast %11 : vector<384x1xf32> to vector<384x256xf32>
    %13 = arith.addf %10, %12 : vector<384x256xf32>
    %cst_11 = arith.constant 0.000000e+00 : f32
    %14 = vector.broadcast %cst_11 : f32 to vector<384x256xf32>
    %15 = arith.maximumf %13, %14 : vector<384x256xf32>
    %c0_12 = arith.constant 0 : index
    %c0_13 = arith.constant 0 : index
    %16 = vector.load %arg6[%c0_12, %c0_13] : memref<384x1xf32, #tpu.memory_space<vmem>>, vector<384x1xf32>
    %17 = vector.broadcast %16 : vector<384x1xf32> to vector<384x256xf32>
    %18 = arith.mulf %15, %17 : vector<384x256xf32>
    %cst_14 = arith.constant dense<0.000000e+00> : vector<256xf32>
    %19 = vector.multi_reduction <add>, %18, %cst_14 [0] : vector<384x256xf32> to vector<256xf32>
    %20 = vector.shape_cast %19 : vector<256xf32> to vector<1x256xf32>
    %c0_15 = arith.constant 0 : index
    %c0_16 = arith.constant 0 : index
    %21 = memref.load %arg7[%c0_15, %c0_16] : memref<1x1xf32, #tpu.memory_space<smem>>
    %22 = vector.broadcast %21 : f32 to vector<1x256xf32>
    %23 = arith.addf %20, %22 : vector<1x256xf32>
    %24 = math.tanh %23 : vector<1x256xf32>
    %c0_17 = arith.constant 0 : index
    %c0_18 = arith.constant 0 : index
    %25 = vector.load %arg8[%c0_17, %c0_18] : memref<1x256xf32, #tpu.memory_space<vmem>>, vector<1x256xf32>
    tpu.vector_store %arg8[%c0_17, %c0_18], %24 {strides = array<i32>} : memref<1x256xf32, #tpu.memory_space<vmem>>, vector<1x256xf32>,
    return
  }
  func.func @transform_0(%arg0: i32) -> (i32, i32) {
    %c0_i32 = arith.constant 0 : i32
    %c0_i32_0 = arith.constant 0 : i32
    return %c0_i32, %arg0 : i32, i32
  }
  func.func @transform_1(%arg0: i32) -> (i32, i32) {
    %c0_i32 = arith.constant 0 : i32
    %c0_i32_0 = arith.constant 0 : i32
    %c0_i32_1 = arith.constant 0 : i32
    return %c0_i32, %c0_i32_0 : i32, i32
  }
  func.func @transform_2(%arg0: i32) -> (i32, i32) {
    %c0_i32 = arith.constant 0 : i32
    %c0_i32_0 = arith.constant 0 : i32
    %c0_i32_1 = arith.constant 0 : i32
    return %c0_i32, %c0_i32_0 : i32, i32
  }
  func.func @transform_3(%arg0: i32) -> (i32, i32) {
    %c0_i32 = arith.constant 0 : i32
    %c0_i32_0 = arith.constant 0 : i32
    %c0_i32_1 = arith.constant 0 : i32
    return %c0_i32, %c0_i32_0 : i32, i32
  }
  func.func @transform_4(%arg0: i32) -> (i32, i32) {
    %c0_i32 = arith.constant 0 : i32
    %c0_i32_0 = arith.constant 0 : i32
    %c0_i32_1 = arith.constant 0 : i32
    return %c0_i32, %c0_i32_0 : i32, i32
  }
  func.func @transform_5(%arg0: i32) -> (i32, i32) {
    %c0_i32 = arith.constant 0 : i32
    %c0_i32_0 = arith.constant 0 : i32
    %c0_i32_1 = arith.constant 0 : i32
    return %c0_i32, %c0_i32_0 : i32, i32
  }
  func.func @transform_6(%arg0: i32) -> (i32, i32) {
    %c0_i32 = arith.constant 0 : i32
    %c0_i32_0 = arith.constant 0 : i32
    %c0_i32_1 = arith.constant 0 : i32
    return %c0_i32, %c0_i32_0 : i32, i32
  }
  func.func @transform_7(%arg0: i32) -> (i32, i32) {
    %c0_i32 = arith.constant 0 : i32
    %c0_i32_0 = arith.constant 0 : i32
    return %c0_i32, %arg0 : i32, i32
  }
}

</mosaic_0001>

<llo_original>
// kernel: tpu_custom_call.1
$region0: #{tpu_custom_call.1}
  #allocation0 [shape = 'u32[]', space=smem, size = 0x4, offset = 0x4, fixed_abs, tag = 'smem constant byte address 0x4 - core index']
  #allocation1 [shape = 'u32[144,128]{1,0:T(1,128)}', space=vmem, size = 0x12000, scoped, tag = 'internal scratch']
  #allocation2 [shape = 'f32[1,1]{1,0:T(1,128)S(6)}', space=smem, size = 0x200, scoped, tag = 'scoped memory for tpu_custom_call.1']
  %s0 = inlined_call_operand.vmem [shape: bf16[32,256], index: 0, kind: input, shape index: {}]
  %s1 = inlined_call_operand.vmem [shape: bf16[512,32], index: 1, kind: input, shape index: {}]
  %s2 = inlined_call_operand.vmem [shape: f32[512,1], index: 2, kind: input, shape index: {}]
  %s3 = inlined_call_operand.vmem [shape: bf16[384,512], index: 3, kind: input, shape index: {}]
  %s4 = inlined_call_operand.vmem [shape: f32[384,1], index: 4, kind: input, shape index: {}]
  %s5 = inlined_call_operand.vmem [shape: f32[384,1], index: 5, kind: input, shape index: {}]
  %s6 = inlined_call_operand.<no memory space> [shape: f32[1,1], index: 6, kind: input, shape index: {}]
  %s7 = inlined_call_operand.hbm [shape: f32[1,256], index: 7, kind: output, shape index: {}]
  %s8 = sld [smem:[#allocation0]]
  $region38: #{tpu_custom_call.1} parent=0
    _
  %s10 = ssub.s32 1, %s8
  %s11 = scalar_select 0, %s10, %s8
  %12 = sst [smem:[#allocation2]] %s6
  $region1: #{tpu_custom_call.1} parent=0
    #allocation3 [shape = 'u8[1024]{0}', space=vmem, size = 0x400, scoped, tag = 'output window, operand 0, single buffered']
    #allocation4 [shape = 's32[1]{0}', space=sflag, size = 0x4, scoped, tag = 'scoped memory for tpu_custom_call.1']
    %13 = vsyncpa [#allocation4], 0
    // Predicated region
    $region2: #{tpu_custom_call.1} parent=1 // pred_check
      _
    $region3: #{tpu_custom_call.1} parent=1 // pred_check_branch
      %15 = sbr.rel (0) target = $region5
    $region4: #{tpu_custom_call.1} parent=1 // pred_region
      _
    $region5: #{tpu_custom_call.1} parent=1 // pred_fallthru
      _
    // Predicated region
    $region6: #{tpu_custom_call.1} parent=1 // pred_check
      _
    $region7: #{tpu_custom_call.1} parent=1 // pred_check_branch
      %17 = sbr.rel (0) target = $region9
    $region8: #{tpu_custom_call.1} parent=1 // pred_region
      _
    $region9: #{tpu_custom_call.1} parent=1 // pred_fallthru
      _
    // Predicated region
    $region10: #{tpu_custom_call.1} parent=1 // pred_check
      _
    $region11: #{tpu_custom_call.1} parent=1 // pred_check_branch
      %19 = sbr.rel (0) target = $region13
    $region12: #{tpu_custom_call.1} parent=1 // pred_region
      _
    $region13: #{tpu_custom_call.1} parent=1 // pred_fallthru
      _
    // Predicated region
    $region14: #{tpu_custom_call.1} parent=1 // pred_check
      _
    $region15: #{tpu_custom_call.1} parent=1 // pred_check_branch
      %21 = sbr.rel (0) target = $region17
    $region16: #{tpu_custom_call.1} parent=1 // pred_region
      _
    $region17: #{tpu_custom_call.1} parent=1 // pred_fallthru
      _
    // Predicated region
    $region18: #{tpu_custom_call.1} parent=1 // pred_check
      _
    $region19: #{tpu_custom_call.1} parent=1 // pred_check_branch
      %23 = sbr.rel (0) target = $region21
    $region20: #{tpu_custom_call.1} parent=1 // pred_region
      _
    $region21: #{tpu_custom_call.1} parent=1 // pred_fallthru
      _
    // Predicated region
    $region22: #{tpu_custom_call.1} parent=1 // pred_check
      _
    $region23: #{tpu_custom_call.1} parent=1 // pred_check_branch
      %25 = sbr.rel (0) target = $region25
    $region24: #{tpu_custom_call.1} parent=1 // pred_region
      _
    $region25: #{tpu_custom_call.1} parent=1 // pred_fallthru
      _
    // Predicated region
    $region26: #{tpu_custom_call.1} parent=1 // pred_check
      _
    $region27: #{tpu_custom_call.1} parent=1 // pred_check_branch
      %27 = sbr.rel (0) target = $region29
    $region28: #{tpu_custom_call.1} parent=1 // pred_region
      _
    $region29: #{tpu_custom_call.1} parent=1 // pred_fallthru
      _
    %v29 = vld [vmem:[%s1] sm:$0xf]
    %v30 = vld [vmem:[%s1 + $0x4] sm:$0xf]
    %v31 = vld [vmem:[%s1 + $0x8] sm:$0xf]
    %v32 = vld [vmem:[%s1 + $0xc] sm:$0xf]
    %v33 = vld [vmem:[%s1 + $0x10] sm:$0xf]
    %v34 = vld [vmem:[%s1 + $0x14] sm:$0xf]
    %v35 = vld [vmem:[%s1 + $0x18] sm:$0xf]
    %v36 = vld [vmem:[%s1 + $0x1c] sm:$0xf]
    %v37 = vld [vmem:[%s1 + $0x20] sm:$0xf]
    %v38 = vld [vmem:[%s1 + $0x24] sm:$0xf]
    %v39 = vld [vmem:[%s1 + $0x28] sm:$0xf]
    %v40 = vld [vmem:[%s1 + $0x2c] sm:$0xf]
    %v41 = vld [vmem:[%s1 + $0x30] sm:$0xf]
    %v42 = vld [vmem:[%s1 + $0x34] sm:$0xf]
    %v43 = vld [vmem:[%s1 + $0x38] sm:$0xf]
    %v44 = vld [vmem:[%s1 + $0x3c] sm:$0xf]
    %v45 = vld [vmem:[%s1 + $0x40] sm:$0xf]
    %v46 = vld [vmem:[%s1 + $0x44] sm:$0xf]
    %v47 = vld [vmem:[%s1 + $0x48] sm:$0xf]
    %v48 = vld [vmem:[%s1 + $0x4c] sm:$0xf]
    %v49 = vld [vmem:[%s1 + $0x50] sm:$0xf]
    %v50 = vld [vmem:[%s1 + $0x54] sm:$0xf]
    %v51 = vld [vmem:[%s1 + $0x58] sm:$0xf]
    %v52 = vld [vmem:[%s1 + $0x5c] sm:$0xf]
    %v53 = vld [vmem:[%s1 + $0x60] sm:$0xf]
    %v54 = vld [vmem:[%s1 + $0x64] sm:$0xf]
    %v55 = vld [vmem:[%s1 + $0x68] sm:$0xf]
    %v56 = vld [vmem:[%s1 + $0x6c] sm:$0xf]
    %v57 = vld [vmem:[%s1 + $0x70] sm:$0xf]
    %v58 = vld [vmem:[%s1 + $0x74] sm:$0xf]
    %v59 = vld [vmem:[%s1 + $0x78] sm:$0xf]
    %v60 = vld [vmem:[%s1 + $0x7c] sm:$0xf]
    %v61 = vld [vmem:[%s1 + $0x80] sm:$0xf]
    %v62 = vld [vmem:[%s1 + $0x84] sm:$0xf]
    %v63 = vld [vmem:[%s1 + $0x88] sm:$0xf]
    %v64 = vld [vmem:[%s1 + $0x8c] sm:$0xf]
    %v65 = vld [vmem:[%s1 + $0x90] sm:$0xf]
    %v66 = vld [vmem:[%s1 + $0x94] sm:$0xf]
    %v67 = vld [vmem:[%s1 + $0x98] sm:$0xf]
    %v68 = vld [vmem:[%s1 + $0x9c] sm:$0xf]
    %v69 = vld [vmem:[%s1 + $0xa0] sm:$0xf]
    %v70 = vld [vmem:[%s1 + $0xa4] sm:$0xf]
    %v71 = vld [vmem:[%s1 + $0xa8] sm:$0xf]
    %v72 = vld [vmem:[%s1 + $0xac] sm:$0xf]
    %v73 = vld [vmem:[%s1 + $0xb0] sm:$0xf]
    %v74 = vld [vmem:[%s1 + $0xb4] sm:$0xf]
    %v75 = vld [vmem:[%s1 + $0xb8] sm:$0xf]
    %v76 = vld [vmem:[%s1 + $0xbc] sm:$0xf]
    %v77 = vld [vmem:[%s1 + $0xc0] sm:$0xf]
    %v78 = vld [vmem:[%s1 + $0xc4] sm:$0xf]
    %v79 = vld [vmem:[%s1 + $0xc8] sm:$0xf]
    %v80 = vld [vmem:[%s1 + $0xcc] sm:$0xf]
    %v81 = vld [vmem:[%s1 + $0xd0] sm:$0xf]
    %v82 = vld [vmem:[%s1 + $0xd4] sm:$0xf]
    %v83 = vld [vmem:[%s1 + $0xd8] sm:$0xf]
    %v84 = vld [vmem:[%s1 + $0xdc] sm:$0xf]
    %v85 = vld [vmem:[%s1 + $0xe0] sm:$0xf]
    %v86 = vld [vmem:[%s1 + $0xe4] sm:$0xf]
    %v87 = vld [vmem:[%s1 + $0xe8] sm:$0xf]
    %v88 = vld [vmem:[%s1 + $0xec] sm:$0xf]
    %v89 = vld [vmem:[%s1 + $0xf0] sm:$0xf]
    %v90 = vld [vmem:[%s1 + $0xf4] sm:$0xf]
    %v91 = vld [vmem:[%s1 + $0xf8] sm:$0xf]
    %v92 = vld [vmem:[%s1 + $0xfc] sm:$0xf]
    %v93 = vld [vmem:[%s0] sm:$0xff]
    %v94 = vld [vmem:[%s0 + $0x8] sm:$0xff]
    %v95 = vld [vmem:[%s0 + $0x10] sm:$0xff]
    %v96 = vld [vmem:[%s0 + $0x18] sm:$0xff]
    %v97 = vld [vmem:[%s2] sm:$0xff]
    %v98 = vld [vmem:[%s2 + $0x8] sm:$0xff]
    %v99 = vld [vmem:[%s2 + $0x10] sm:$0xff]
    %v100 = vld [vmem:[%s2 + $0x18] sm:$0xff]
    %v101 = vld [vmem:[%s2 + $0x20] sm:$0xff]
    %v102 = vld [vmem:[%s2 + $0x28] sm:$0xff]
    %v103 = vld [vmem:[%s2 + $0x30] sm:$0xff]
    %v104 = vld [vmem:[%s2 + $0x38] sm:$0xff]
    %v105 = vld [vmem:[%s2 + $0x40] sm:$0xff]
    %v106 = vld [vmem:[%s2 + $0x48] sm:$0xff]
    %v107 = vld [vmem:[%s2 + $0x50] sm:$0xff]
    %v108 = vld [vmem:[%s2 + $0x58] sm:$0xff]
    %v109 = vld [vmem:[%s2 + $0x60] sm:$0xff]
    %v110 = vld [vmem:[%s2 + $0x68] sm:$0xff]
    %v111 = vld [vmem:[%s2 + $0x70] sm:$0xff]
    %v112 = vld [vmem:[%s2 + $0x78] sm:$0xff]
    %v113 = vld [vmem:[%s2 + $0x80] sm:$0xff]
    %v114 = vld [vmem:[%s2 + $0x88] sm:$0xff]
    %v115 = vld [vmem:[%s2 + $0x90] sm:$0xff]
    %v116 = vld [vmem:[%s2 + $0x98] sm:$0xff]
    %v117 = vld [vmem:[%s2 + $0xa0] sm:$0xff]
    %v118 = vld [vmem:[%s2 + $0xa8] sm:$0xff]
    %v119 = vld [vmem:[%s2 + $0xb0] sm:$0xff]
    %v120 = vld [vmem:[%s2 + $0xb8] sm:$0xff]
    %v121 = vld [vmem:[%s2 + $0xc0] sm:$0xff]
    %v122 = vld [vmem:[%s2 + $0xc8] sm:$0xff]
    %v123 = vld [vmem:[%s2 + $0xd0] sm:$0xff]
    %v124 = vld [vmem:[%s2 + $0xd8] sm:$0xff]
    %v125 = vld [vmem:[%s2 + $0xe0] sm:$0xff]
    %v126 = vld [vmem:[%s2 + $0xe8] sm:$0xff]
    %v127 = vld [vmem:[%s2 + $0xf0] sm:$0xff]
    %v128 = vld [vmem:[%s2 + $0xf8] sm:$0xff]
    %v129 = vld [vmem:[%s2 + $0x100] sm:$0xff]
    %v130 = vld [vmem:[%s2 + $0x108] sm:$0xff]
    %v131 = vld [vmem:[%s2 + $0x110] sm:$0xff]
    %v132 = vld [vmem:[%s2 + $0x118] sm:$0xff]
    %v133 = vld [vmem:[%s2 + $0x120] sm:$0xff]
    %v134 = vld [vmem:[%s2 + $0x128] sm:$0xff]
    %v135 = vld [vmem:[%s2 + $0x130] sm:$0xff]
    %v136 = vld [vmem:[%s2 + $0x138] sm:$0xff]
    %v137 = vld [vmem:[%s2 + $0x140] sm:$0xff]
    %v138 = vld [vmem:[%s2 + $0x148] sm:$0xff]
    %v139 = vld [vmem:[%s2 + $0x150] sm:$0xff]
    %v140 = vld [vmem:[%s2 + $0x158] sm:$0xff]
    %v141 = vld [vmem:[%s2 + $0x160] sm:$0xff]
    %v142 = vld [vmem:[%s2 + $0x168] sm:$0xff]
    %v143 = vld [vmem:[%s2 + $0x170] sm:$0xff]
    %v144 = vld [vmem:[%s2 + $0x178] sm:$0xff]
    %v145 = vld [vmem:[%s2 + $0x180] sm:$0xff]
    %v146 = vld [vmem:[%s2 + $0x188] sm:$0xff]
    %v147 = vld [vmem:[%s2 + $0x190] sm:$0xff]
    %v148 = vld [vmem:[%s2 + $0x198] sm:$0xff]
    %v149 = vld [vmem:[%s2 + $0x1a0] sm:$0xff]
    %v150 = vld [vmem:[%s2 + $0x1a8] sm:$0xff]
    %v151 = vld [vmem:[%s2 + $0x1b0] sm:$0xff]
    %v152 = vld [vmem:[%s2 + $0x1b8] sm:$0xff]
    %v153 = vld [vmem:[%s2 + $0x1c0] sm:$0xff]
    %v154 = vld [vmem:[%s2 + $0x1c8] sm:$0xff]
    %v155 = vld [vmem:[%s2 + $0x1d0] sm:$0xff]
    %v156 = vld [vmem:[%s2 + $0x1d8] sm:$0xff]
    %v157 = vld [vmem:[%s2 + $0x1e0] sm:$0xff]
    %v158 = vld [vmem:[%s2 + $0x1e8] sm:$0xff]
    %v159 = vld [vmem:[%s2 + $0x1f0] sm:$0xff]
    %v160 = vld [vmem:[%s2 + $0x1f8] sm:$0xff]
    %162 = vset.pattern.permute.xlu0 0
    %163 = vperm.xlu0 %162, %v97
    %v164 = vpop.permute.xlu0 %163
    %167 = vset.pattern.permute.xlu0 0
    %168 = vperm.xlu0 %167, %v98
    %v169 = vpop.permute.xlu0 %168
    %172 = vset.pattern.permute.xlu0 0
    %173 = vperm.xlu0 %172, %v99
    %v174 = vpop.permute.xlu0 %173
    %177 = vset.pattern.permute.xlu0 0
    %178 = vperm.xlu0 %177, %v100
    %v179 = vpop.permute.xlu0 %178
    %182 = vset.pattern.permute.xlu0 0
    %183 = vperm.xlu0 %182, %v101
    %v184 = vpop.permute.xlu0 %183
    %187 = vset.pattern.permute.xlu0 0
    %188 = vperm.xlu0 %187, %v102
    %v189 = vpop.permute.xlu0 %188
    %192 = vset.pattern.permute.xlu0 0
    %193 = vperm.xlu0 %192, %v103
    %v194 = vpop.permute.xlu0 %193
    %197 = vset.pattern.permute.xlu0 0
    %198 = vperm.xlu0 %197, %v104
    %v199 = vpop.permute.xlu0 %198
    %202 = vset.pattern.permute.xlu0 0
    %203 = vperm.xlu0 %202, %v105
    %v204 = vpop.permute.xlu0 %203
    %207 = vset.pattern.permute.xlu0 0
    %208 = vperm.xlu0 %207, %v106
    %v209 = vpop.permute.xlu0 %208
    %212 = vset.pattern.permute.xlu0 0
    %213 = vperm.xlu0 %212, %v107
    %v214 = vpop.permute.xlu0 %213
    %217 = vset.pattern.permute.xlu0 0
    %218 = vperm.xlu0 %217, %v108
    %v219 = vpop.permute.xlu0 %218
    %222 = vset.pattern.permute.xlu0 0
    %223 = vperm.xlu0 %222, %v109
    %v224 = vpop.permute.xlu0 %223
    %227 = vset.pattern.permute.xlu0 0
    %228 = vperm.xlu0 %227, %v110
    %v229 = vpop.permute.xlu0 %228
    %232 = vset.pattern.permute.xlu0 0
    %233 = vperm.xlu0 %232, %v111
    %v234 = vpop.permute.xlu0 %233
    %237 = vset.pattern.permute.xlu0 0
    %238 = vperm.xlu0 %237, %v112
    %v239 = vpop.permute.xlu0 %238
    %242 = vset.pattern.permute.xlu0 0
    %243 = vperm.xlu0 %242, %v113
    %v244 = vpop.permute.xlu0 %243
    %247 = vset.pattern.permute.xlu0 0
    %248 = vperm.xlu0 %247, %v114
    %v249 = vpop.permute.xlu0 %248
    %252 = vset.pattern.permute.xlu0 0
    %253 = vperm.xlu0 %252, %v115
    %v254 = vpop.permute.xlu0 %253
    %257 = vset.pattern.permute.xlu0 0
    %258 = vperm.xlu0 %257, %v116
    %v259 = vpop.permute.xlu0 %258
    %262 = vset.pattern.permute.xlu0 0
    %263 = vperm.xlu0 %262, %v117
    %v264 = vpop.permute.xlu0 %263
    %267 = vset.pattern.permute.xlu0 0
    %268 = vperm.xlu0 %267, %v118
    %v269 = vpop.permute.xlu0 %268
    %272 = vset.pattern.permute.xlu0 0
    %273 = vperm.xlu0 %272, %v119
    %v274 = vpop.permute.xlu0 %273
    %277 = vset.pattern.permute.xlu0 0
    %278 = vperm.xlu0 %277, %v120
    %v279 = vpop.permute.xlu0 %278
    %282 = vset.pattern.permute.xlu0 0
    %283 = vperm.xlu0 %282, %v121
    %v284 = vpop.permute.xlu0 %283
    %287 = vset.pattern.permute.xlu0 0
    %288 = vperm.xlu0 %287, %v122
    %v289 = vpop.permute.xlu0 %288
    %292 = vset.pattern.permute.xlu0 0
    %293 = vperm.xlu0 %292, %v123
    %v294 = vpop.permute.xlu0 %293
    %297 = vset.pattern.permute.xlu0 0
    %298 = vperm.xlu0 %297, %v124
    %v299 = vpop.permute.xlu0 %298
    %302 = vset.pattern.permute.xlu0 0
    %303 = vperm.xlu0 %302, %v125
    %v304 = vpop.permute.xlu0 %303
    %307 = vset.pattern.permute.xlu0 0
    %308 = vperm.xlu0 %307, %v126
    %v309 = vpop.permute.xlu0 %308
    %312 = vset.pattern.permute.xlu0 0
    %313 = vperm.xlu0 %312, %v127
    %v314 = vpop.permute.xlu0 %313
    %317 = vset.pattern.permute.xlu0 0
    %318 = vperm.xlu0 %317, %v128
    %v319 = vpop.permute.xlu0 %318
    %322 = vset.pattern.permute.xlu0 0
    %323 = vperm.xlu0 %322, %v129
    %v324 = vpop.permute.xlu0 %323
    %327 = vset.pattern.permute.xlu0 0
    %328 = vperm.xlu0 %327, %v130
    %v329 = vpop.permute.xlu0 %328
    %332 = vset.pattern.permute.xlu0 0
    %333 = vperm.xlu0 %332, %v131
    %v334 = vpop.permute.xlu0 %333
    %337 = vset.pattern.permute.xlu0 0
    %338 = vperm.xlu0 %337, %v132
    %v339 = vpop.permute.xlu0 %338
    %342 = vset.pattern.permute.xlu0 0
    %343 = vperm.xlu0 %342, %v133
    %v344 = vpop.permute.xlu0 %343
    %347 = vset.pattern.permute.xlu0 0
    %348 = vperm.xlu0 %347, %v134
    %v349 = vpop.permute.xlu0 %348
    %352 = vset.pattern.permute.xlu0 0
    %353 = vperm.xlu0 %352, %v135
    %v354 = vpop.permute.xlu0 %353
    %357 = vset.pattern.permute.xlu0 0
    %358 = vperm.xlu0 %357, %v136
    %v359 = vpop.permute.xlu0 %358
    %362 = vset.pattern.permute.xlu0 0
    %363 = vperm.xlu0 %362, %v137
    %v364 = vpop.permute.xlu0 %363
    %367 = vset.pattern.permute.xlu0 0
    %368 = vperm.xlu0 %367, %v138
    %v369 = vpop.permute.xlu0 %368
    %372 = vset.pattern.permute.xlu0 0
    %373 = vperm.xlu0 %372, %v139
    %v374 = vpop.permute.xlu0 %373
    %377 = vset.pattern.permute.xlu0 0
    %378 = vperm.xlu0 %377, %v140
    %v379 = vpop.permute.xlu0 %378
    %382 = vset.pattern.permute.xlu0 0
    %383 = vperm.xlu0 %382, %v141
    %v384 = vpop.permute.xlu0 %383
    %387 = vset.pattern.permute.xlu0 0
    %388 = vperm.xlu0 %387, %v142
    %v389 = vpop.permute.xlu0 %388
    %392 = vset.pattern.permute.xlu0 0
    %393 = vperm.xlu0 %392, %v143
    %v394 = vpop.permute.xlu0 %393
    %397 = vset.pattern.permute.xlu0 0
    %398 = vperm.xlu0 %397, %v144
    %v399 = vpop.permute.xlu0 %398
    %402 = vset.pattern.permute.xlu0 0
    %403 = vperm.xlu0 %402, %v145
    %v404 = vpop.permute.xlu0 %403
    %407 = vset.pattern.permute.xlu0 0
    %408 = vperm.xlu0 %407, %v146
    %v409 = vpop.permute.xlu0 %408
    %412 = vset.pattern.permute.xlu0 0
    %413 = vperm.xlu0 %412, %v147
    %v414 = vpop.permute.xlu0 %413
    %417 = vset.pattern.permute.xlu0 0
    %418 = vperm.xlu0 %417, %v148
    %v419 = vpop.permute.xlu0 %418
    %422 = vset.pattern.permute.xlu0 0
    %423 = vperm.xlu0 %422, %v149
    %v424 = vpop.permute.xlu0 %423
    %427 = vset.pattern.permute.xlu0 0
    %428 = vperm.xlu0 %427, %v150
    %v429 = vpop.permute.xlu0 %428
    %432 = vset.pattern.permute.xlu0 0
    %433 = vperm.xlu0 %432, %v151
    %v434 = vpop.permute.xlu0 %433
    %437 = vset.pattern.permute.xlu0 0
    %438 = vperm.xlu0 %437, %v152
    %v439 = vpop.permute.xlu0 %438
    %442 = vset.pattern.permute.xlu0 0
    %443 = vperm.xlu0 %442, %v153
    %v444 = vpop.permute.xlu0 %443
    %447 = vset.pattern.permute.xlu0 0
    %448 = vperm.xlu0 %447, %v154
    %v449 = vpop.permute.xlu0 %448
    %452 = vset.pattern.permute.xlu0 0
    %453 = vperm.xlu0 %452, %v155
    %v454 = vpop.permute.xlu0 %453
    %457 = vset.pattern.permute.xlu0 0
    %458 = vperm.xlu0 %457, %v156
    %v459 = vpop.permute.xlu0 %458
    %462 = vset.pattern.permute.xlu0 0
    %463 = vperm.xlu0 %462, %v157
    %v464 = vpop.permute.xlu0 %463
    %467 = vset.pattern.permute.xlu0 0
    %468 = vperm.xlu0 %467, %v158
    %v469 = vpop.permute.xlu0 %468
    %472 = vset.pattern.permute.xlu0 0
    %473 = vperm.xlu0 %472, %v159
    %v474 = vpop.permute.xlu0 %473
    %477 = vset.pattern.permute.xlu0 0
    %478 = vperm.xlu0 %477, %v160
    %v479 = vpop.permute.xlu0 %478
    %v545 = vunpack.c.l.b16 %v29
    %v546 = vunpack.c.l.b16 %v30
    %v547 = vunpack.c.l.b16 %v31
    %v548 = vunpack.c.l.b16 %v32
    %v549 = vunpack.c.l.b16 %v33
    %v550 = vunpack.c.l.b16 %v34
    %v551 = vunpack.c.l.b16 %v35
    %v552 = vunpack.c.l.b16 %v36
    %v553 = vunpack.c.l.b16 %v37
    %v554 = vunpack.c.l.b16 %v38
    %v555 = vunpack.c.l.b16 %v39
    %v556 = vunpack.c.l.b16 %v40
    %v557 = vunpack.c.l.b16 %v41
    %v558 = vunpack.c.l.b16 %v42
    %v559 = vunpack.c.l.b16 %v43
    %v560 = vunpack.c.l.b16 %v44
    %v561 = vunpack.c.l.b16 %v45
    %v562 = vunpack.c.l.b16 %v46
    %v563 = vunpack.c.l.b16 %v47
    %v564 = vunpack.c.l.b16 %v48
    %v565 = vunpack.c.l.b16 %v49
    %v566 = vunpack.c.l.b16 %v50
    %v567 = vunpack.c.l.b16 %v51
    %v568 = vunpack.c.l.b16 %v52
    %v569 = vunpack.c.l.b16 %v53
    %v570 = vunpack.c.l.b16 %v54
    %v571 = vunpack.c.l.b16 %v55
    %v572 = vunpack.c.l.b16 %v56
    %v573 = vunpack.c.l.b16 %v57
    %v574 = vunpack.c.l.b16 %v58
    %v575 = vunpack.c.l.b16 %v59
    %v576 = vunpack.c.l.b16 %v60
    %v577 = vunpack.c.l.b16 %v61
    %v578 = vunpack.c.l.b16 %v62
    %v579 = vunpack.c.l.b16 %v63
    %v580 = vunpack.c.l.b16 %v64
    %v581 = vunpack.c.l.b16 %v65
    %v582 = vunpack.c.l.b16 %v66
    %v583 = vunpack.c.l.b16 %v67
    %v584 = vunpack.c.l.b16 %v68
    %v585 = vunpack.c.l.b16 %v69
    %v586 = vunpack.c.l.b16 %v70
    %v587 = vunpack.c.l.b16 %v71
    %v588 = vunpack.c.l.b16 %v72
    %v589 = vunpack.c.l.b16 %v73
    %v590 = vunpack.c.l.b16 %v74
    %v591 = vunpack.c.l.b16 %v75
    %v592 = vunpack.c.l.b16 %v76
    %v593 = vunpack.c.l.b16 %v77
    %v594 = vunpack.c.l.b16 %v78
    %v595 = vunpack.c.l.b16 %v79
    %v596 = vunpack.c.l.b16 %v80
    %v597 = vunpack.c.l.b16 %v81
    %v598 = vunpack.c.l.b16 %v82
    %v599 = vunpack.c.l.b16 %v83
    %v600 = vunpack.c.l.b16 %v84
    %v601 = vunpack.c.l.b16 %v85
    %v602 = vunpack.c.l.b16 %v86
    %v603 = vunpack.c.l.b16 %v87
    %v604 = vunpack.c.l.b16 %v88
    %v605 = vunpack.c.l.b16 %v89
    %v606 = vunpack.c.l.b16 %v90
    %v607 = vunpack.c.l.b16 %v91
    %v608 = vunpack.c.l.b16 %v92
    %v609 = vpack.c.b16 %v546, %v545
    %v610 = vpack.c.b16 %v548, %v547
    %v611 = vpack.c.b16 %v550, %v549
    %v612 = vpack.c.b16 %v552, %v551
    %v613 = vpack.c.b16 %v554, %v553
    %v614 = vpack.c.b16 %v556, %v555
    %v615 = vpack.c.b16 %v558, %v557
    %v616 = vpack.c.b16 %v560, %v559
    %v617 = vpack.c.b16 %v562, %v561
    %v618 = vpack.c.b16 %v564, %v563
    %v619 = vpack.c.b16 %v566, %v565
    %v620 = vpack.c.b16 %v568, %v567
    %v621 = vpack.c.b16 %v570, %v569
    %v622 = vpack.c.b16 %v572, %v571
    %v623 = vpack.c.b16 %v574, %v573
    %v624 = vpack.c.b16 %v576, %v575
    %v625 = vpack.c.b16 %v578, %v577
    %v626 = vpack.c.b16 %v580, %v579
    %v627 = vpack.c.b16 %v582, %v581
    %v628 = vpack.c.b16 %v584, %v583
    %v629 = vpack.c.b16 %v586, %v585
    %v630 = vpack.c.b16 %v588, %v587
    %v631 = vpack.c.b16 %v590, %v589
    %v632 = vpack.c.b16 %v592, %v591
    %v633 = vpack.c.b16 %v594, %v593
    %v634 = vpack.c.b16 %v596, %v595
    %v635 = vpack.c.b16 %v598, %v597
    %v636 = vpack.c.b16 %v600, %v599
    %v637 = vpack.c.b16 %v602, %v601
    %v638 = vpack.c.b16 %v604, %v603
    %v639 = vpack.c.b16 %v606, %v605
    %v640 = vpack.c.b16 %v608, %v607
    %v645 = vunpack.c.l.b16 %v93
    %v646 = vunpack.c.h.b16 %v93
    %v647 = vunpack.c.l.b16 %v94
    %v648 = vunpack.c.h.b16 %v94
    %v649 = vunpack.c.l.b16 %v95
    %v650 = vunpack.c.h.b16 %v95
    %v651 = vunpack.c.l.b16 %v96
    %v652 = vunpack.c.h.b16 %v96
    %v653 = vpack.c.b16 %v647, %v645
    %v654 = vpack.c.b16 %v648, %v646
    %v655 = vpack.c.b16 %v651, %v649
    %v656 = vpack.c.b16 %v652, %v650
    %vm661 = vcmask 261120
    %v663 = vsel %vm661, %v609, 0
    %v666 = vsel %vm661, %v610, 0
    %v669 = vsel %vm661, %v611, 0
    %v672 = vsel %vm661, %v612, 0
    %v675 = vsel %vm661, %v613, 0
    %v678 = vsel %vm661, %v614, 0
    %v681 = vsel %vm661, %v615, 0
    %v684 = vsel %vm661, %v616, 0
    %v687 = vsel %vm661, %v617, 0
    %v690 = vsel %vm661, %v618, 0
    %v693 = vsel %vm661, %v619, 0
    %v696 = vsel %vm661, %v620, 0
    %v699 = vsel %vm661, %v621, 0
    %v702 = vsel %vm661, %v622, 0
    %v705 = vsel %vm661, %v623, 0
    %v708 = vsel %vm661, %v624, 0
    %v711 = vsel %vm661, %v625, 0
    %v714 = vsel %vm661, %v626, 0
    %v717 = vsel %vm661, %v627, 0
    %v720 = vsel %vm661, %v628, 0
    %v723 = vsel %vm661, %v629, 0
    %v726 = vsel %vm661, %v630, 0
    %v729 = vsel %vm661, %v631, 0
    %v732 = vsel %vm661, %v632, 0
    %v735 = vsel %vm661, %v633, 0
    %v738 = vsel %vm661, %v634, 0
    %v741 = vsel %vm661, %v635, 0
    %v744 = vsel %vm661, %v636, 0
    %v747 = vsel %vm661, %v637, 0
    %v750 = vsel %vm661, %v638, 0
    %v753 = vsel %vm661, %v639, 0
    %v756 = vsel %vm661, %v640, 0
    %758 = vmatprep.subr.bf16.mxu0 %v654
    %759 = vmatpush1.bf16.msra.mxu0 %v653
    %760 = vmatprep.subr.bf16.mxu0 %v656
    %761 = vmatpush1.bf16.msra.mxu0 %v655
    %762 = vmatprep.subr.bf16.mxu0 0
    %763 = vmatpush1.bf16.msra.mxu0 0
    %764 = vmatprep.subr.bf16.mxu0 0
    %765 = vmatpush1.bf16.msra.mxu0 0
    %766 = vmatprep.subr.bf16.mxu0 0
    %767 = vmatpush1.bf16.msra.mxu0 0
    %768 = vmatprep.subr.bf16.mxu0 0
    %769 = vmatpush1.bf16.msra.mxu0 0
    %770 = vmatprep.subr.bf16.mxu0 0
    %771 = vmatpush1.bf16.msra.mxu0 0
    %772 = vmatprep.subr.bf16.mxu0 0
    %773 = vmatpush1.bf16.msra.mxu0 0
    %774 = vmatprep.subr.bf16.mxu0 0
    %775 = vmatpush1.bf16.msra.mxu0 0
    %776 = vmatprep.subr.bf16.mxu0 0
    %777 = vmatpush1.bf16.msra.mxu0 0
    %778 = vmatprep.subr.bf16.mxu0 0
    %779 = vmatpush1.bf16.msra.mxu0 0
    %780 = vmatprep.subr.bf16.mxu0 0
    %781 = vmatpush1.bf16.msra.mxu0 0
    %782 = vmatprep.subr.bf16.mxu0 0
    %783 = vmatpush1.bf16.msra.mxu0 0
    %784 = vmatprep.subr.bf16.mxu0 0
    %785 = vmatpush1.bf16.msra.mxu0 0
    %786 = vmatprep.subr.bf16.mxu0 0
    %787 = vmatpush1.bf16.msra.mxu0 0
    %788 = vmatprep.subr.bf16.mxu0 0
    %789 = vmatpush1.bf16.msra.mxu0 0
    %790 = vmatprep.mubr.bf16.mxu0 0
    %791 = vmatmul.mubr.bf16.gmra.mrb[0].mxu0 %v663
    %v792 = vpop.f32.mrb[0].mxu0
    %v793 = vadd.f32 %v164, %v792
    %v794 = vpop.f32.mrb[0].mxu0
    %v795 = vadd.f32 %v164, %v794
    %v796 = vpop.f32.mrb[0].mxu0
    %v797 = vadd.f32 %v169, %v796
    %v798 = vpop.f32.mrb[0].mxu0
    %v799 = vadd.f32 %v169, %v798
    %800 = vmatprep.mubr.bf16.mxu0 0
    %801 = vmatmul.mubr.bf16.gmra.mrb[0].mxu0 %v666
    %v802 = vpop.f32.mrb[0].mxu0
    %v803 = vadd.f32 %v174, %v802
    %v804 = vpop.f32.mrb[0].mxu0
    %v805 = vadd.f32 %v174, %v804
    %v806 = vpop.f32.mrb[0].mxu0
    %v807 = vadd.f32 %v179, %v806
    %v808 = vpop.f32.mrb[0].mxu0
    %v809 = vadd.f32 %v179, %v808
    %810 = vmatprep.mubr.bf16.mxu0 0
    %811 = vmatmul.mubr.bf16.gmra.mrb[0].mxu0 %v669
    %v812 = vpop.f32.mrb[0].mxu0
    %v813 = vadd.f32 %v184, %v812
    %v814 = vpop.f32.mrb[0].mxu0
    %v815 = vadd.f32 %v184, %v814
    %v816 = vpop.f32.mrb[0].mxu0
    %v817 = vadd.f32 %v189, %v816
    %v818 = vpop.f32.mrb[0].mxu0
    %v819 = vadd.f32 %v189, %v818
    %820 = vmatprep.mubr.bf16.mxu0 0
    %821 = vmatmul.mubr.bf16.gmra.mrb[0].mxu0 %v672
    %v822 = vpop.f32.mrb[0].mxu0
    %v823 = vadd.f32 %v194, %v822
    %v824 = vpop.f32.mrb[0].mxu0
    %v825 = vadd.f32 %v194, %v824
    %v826 = vpop.f32.mrb[0].mxu0
    %v827 = vadd.f32 %v199, %v826
    %v828 = vpop.f32.mrb[0].mxu0
    %v829 = vadd.f32 %v199, %v828
    %830 = vmatprep.mubr.bf16.mxu0 0
    %831 = vmatmul.mubr.bf16.gmra.mrb[0].mxu0 %v675
    %v832 = vpop.f32.mrb[0].mxu0
    %v833 = vadd.f32 %v204, %v832
    %v834 = vpop.f32.mrb[0].mxu0
    %v835 = vadd.f32 %v204, %v834
    %v836 = vpop.f32.mrb[0].mxu0
    %v837 = vadd.f32 %v209, %v836
    %v838 = vpop.f32.mrb[0].mxu0
    %v839 = vadd.f32 %v209, %v838
    %840 = vmatprep.mubr.bf16.mxu0 0
    %841 = vmatmul.mubr.bf16.gmra.mrb[0].mxu0 %v678
    %v842 = vpop.f32.mrb[0].mxu0
    %v843 = vadd.f32 %v214, %v842
    %v844 = vpop.f32.mrb[0].mxu0
    %v845 = vadd.f32 %v214, %v844
    %v846 = vpop.f32.mrb[0].mxu0
    %v847 = vadd.f32 %v219, %v846
    %v848 = vpop.f32.mrb[0].mxu0
    %v849 = vadd.f32 %v219, %v848
    %850 = vmatprep.mubr.bf16.mxu0 0
    %851 = vmatmul.mubr.bf16.gmra.mrb[0].mxu0 %v681
    %v852 = vpop.f32.mrb[0].mxu0
    %v853 = vadd.f32 %v224, %v852
    %v854 = vpop.f32.mrb[0].mxu0
    %v855 = vadd.f32 %v224, %v854
    %v856 = vpop.f32.mrb[0].mxu0
    %v857 = vadd.f32 %v229, %v856
    %v858 = vpop.f32.mrb[0].mxu0
    %v859 = vadd.f32 %v229, %v858
    %860 = vmatprep.mubr.bf16.mxu0 0
    %861 = vmatmul.mubr.bf16.gmra.mrb[0].mxu0 %v684
    %v862 = vpop.f32.mrb[0].mxu0
    %v863 = vadd.f32 %v234, %v862
    %v864 = vpop.f32.mrb[0].mxu0
    %v865 = vadd.f32 %v234, %v864
    %v866 = vpop.f32.mrb[0].mxu0
    %v867 = vadd.f32 %v239, %v866
    %v868 = vpop.f32.mrb[0].mxu0
    %v869 = vadd.f32 %v239, %v868
    %870 = vmatprep.mubr.bf16.mxu0 0
    %871 = vmatmul.mubr.bf16.gmra.mrb[0].mxu0 %v687
    %v872 = vpop.f32.mrb[0].mxu0
    %v873 = vadd.f32 %v244, %v872
    %v874 = vpop.f32.mrb[0].mxu0
    %v875 = vadd.f32 %v244, %v874
    %v876 = vpop.f32.mrb[0].mxu0
    %v877 = vadd.f32 %v249, %v876
    %v878 = vpop.f32.mrb[0].mxu0
    %v879 = vadd.f32 %v249, %v878
    %880 = vmatprep.mubr.bf16.mxu0 0
    %881 = vmatmul.mubr.bf16.gmra.mrb[0].mxu0 %v690
    %v882 = vpop.f32.mrb[0].mxu0
    %v883 = vadd.f32 %v254, %v882
    %v884 = vpop.f32.mrb[0].mxu0
    %v885 = vadd.f32 %v254, %v884
    %v886 = vpop.f32.mrb[0].mxu0
    %v887 = vadd.f32 %v259, %v886
    %v888 = vpop.f32.mrb[0].mxu0
    %v889 = vadd.f32 %v259, %v888
    %890 = vmatprep.mubr.bf16.mxu0 0
    %891 = vmatmul.mubr.bf16.gmra.mrb[0].mxu0 %v693
    %v892 = vpop.f32.mrb[0].mxu0
    %v893 = vadd.f32 %v264, %v892
    %v894 = vpop.f32.mrb[0].mxu0
    %v895 = vadd.f32 %v264, %v894
    %v896 = vpop.f32.mrb[0].mxu0
    %v897 = vadd.f32 %v269, %v896
    %v898 = vpop.f32.mrb[0].mxu0
    %v899 = vadd.f32 %v269, %v898
    %900 = vmatprep.mubr.bf16.mxu0 0
    %901 = vmatmul.mubr.bf16.gmra.mrb[0].mxu0 %v696
    %v902 = vpop.f32.mrb[0].mxu0
    %v903 = vadd.f32 %v274, %v902
    %v904 = vpop.f32.mrb[0].mxu0
    %v905 = vadd.f32 %v274, %v904
    %v906 = vpop.f32.mrb[0].mxu0
    %v907 = vadd.f32 %v279, %v906
    %v908 = vpop.f32.mrb[0].mxu0
    %v909 = vadd.f32 %v279, %v908
    %910 = vmatprep.mubr.bf16.mxu0 0
    %911 = vmatmul.mubr.bf16.gmra.mrb[0].mxu0 %v699
    %v912 = vpop.f32.mrb[0].mxu0
    %v913 = vadd.f32 %v284, %v912
    %v914 = vpop.f32.mrb[0].mxu0
    %v915 = vadd.f32 %v284, %v914
    %v916 = vpop.f32.mrb[0].mxu0
    %v917 = vadd.f32 %v289, %v916
    %v918 = vpop.f32.mrb[0].mxu0
    %v919 = vadd.f32 %v289, %v918
    %920 = vmatprep.mubr.bf16.mxu0 0
    %921 = vmatmul.mubr.bf16.gmra.mrb[0].mxu0 %v702
    %v922 = vpop.f32.mrb[0].mxu0
    %v923 = vadd.f32 %v294, %v922
    %v924 = vpop.f32.mrb[0].mxu0
    %v925 = vadd.f32 %v294, %v924
    %v926 = vpop.f32.mrb[0].mxu0
    %v927 = vadd.f32 %v299, %v926
    %v928 = vpop.f32.mrb[0].mxu0
    %v929 = vadd.f32 %v299, %v928
    %930 = vmatprep.mubr.bf16.mxu0 0
    %931 = vmatmul.mubr.bf16.gmra.mrb[0].mxu0 %v705
    %v932 = vpop.f32.mrb[0].mxu0
    %v933 = vadd.f32 %v304, %v932
    %v934 = vpop.f32.mrb[0].mxu0
    %v935 = vadd.f32 %v304, %v934
    %v936 = vpop.f32.mrb[0].mxu0
    %v937 = vadd.f32 %v309, %v936
    %v938 = vpop.f32.mrb[0].mxu0
    %v939 = vadd.f32 %v309, %v938
    %940 = vmatprep.mubr.bf16.mxu0 0
    %941 = vmatmul.mubr.bf16.gmra.mrb[0].mxu0 %v708
    %v942 = vpop.f32.mrb[0].mxu0
    %v943 = vadd.f32 %v314, %v942
    %v944 = vpop.f32.mrb[0].mxu0
    %v945 = vadd.f32 %v314, %v944
    %v946 = vpop.f32.mrb[0].mxu0
    %v947 = vadd.f32 %v319, %v946
    %v948 = vpop.f32.mrb[0].mxu0
    %v949 = vadd.f32 %v319, %v948
    %950 = vmatprep.mubr.bf16.mxu0 0
    %951 = vmatmul.mubr.bf16.gmra.mrb[0].mxu0 %v711
    %v952 = vpop.f32.mrb[0].mxu0
    %v953 = vadd.f32 %v324, %v952
    %v954 = vpop.f32.mrb[0].mxu0
    %v955 = vadd.f32 %v324, %v954
    %v956 = vpop.f32.mrb[0].mxu0
    %v957 = vadd.f32 %v329, %v956
    %v958 = vpop.f32.mrb[0].mxu0
    %v959 = vadd.f32 %v329, %v958
    %960 = vmatprep.mubr.bf16.mxu0 0
    %961 = vmatmul.mubr.bf16.gmra.mrb[0].mxu0 %v714
    %v962 = vpop.f32.mrb[0].mxu0
    %v963 = vadd.f32 %v334, %v962
    %v964 = vpop.f32.mrb[0].mxu0
    %v965 = vadd.f32 %v334, %v964
    %v966 = vpop.f32.mrb[0].mxu0
    %v967 = vadd.f32 %v339, %v966
    %v968 = vpop.f32.mrb[0].mxu0
    %v969 = vadd.f32 %v339, %v968
    %970 = vmatprep.mubr.bf16.mxu0 0
    %971 = vmatmul.mubr.bf16.gmra.mrb[0].mxu0 %v717
    %v972 = vpop.f32.mrb[0].mxu0
    %v973 = vadd.f32 %v344, %v972
    %v974 = vpop.f32.mrb[0].mxu0
    %v975 = vadd.f32 %v344, %v974
    %v976 = vpop.f32.mrb[0].mxu0
    %v977 = vadd.f32 %v349, %v976
    %v978 = vpop.f32.mrb[0].mxu0
    %v979 = vadd.f32 %v349, %v978
    %980 = vmatprep.mubr.bf16.mxu0 0
    %981 = vmatmul.mubr.bf16.gmra.mrb[0].mxu0 %v720
    %v982 = vpop.f32.mrb[0].mxu0
    %v983 = vadd.f32 %v354, %v982
    %v984 = vpop.f32.mrb[0].mxu0
    %v985 = vadd.f32 %v354, %v984
    %v986 = vpop.f32.mrb[0].mxu0
    %v987 = vadd.f32 %v359, %v986
    %v988 = vpop.f32.mrb[0].mxu0
    %v989 = vadd.f32 %v359, %v988
    %990 = vmatprep.mubr.bf16.mxu0 0
    %991 = vmatmul.mubr.bf16.gmra.mrb[0].mxu0 %v723
    %v992 = vpop.f32.mrb[0].mxu0
    %v993 = vadd.f32 %v364, %v992
    %v994 = vpop.f32.mrb[0].mxu0
    %v995 = vadd.f32 %v364, %v994
    %v996 = vpop.f32.mrb[0].mxu0
    %v997 = vadd.f32 %v369, %v996
    %v998 = vpop.f32.mrb[0].mxu0
    %v999 = vadd.f32 %v369, %v998
    %1000 = vmatprep.mubr.bf16.mxu0 0
    %1001 = vmatmul.mubr.bf16.gmra.mrb[0].mxu0 %v726
    %v1002 = vpop.f32.mrb[0].mxu0
    %v1003 = vadd.f32 %v374, %v1002
    %v1004 = vpop.f32.mrb[0].mxu0
    %v1005 = vadd.f32 %v374, %v1004
    %v1006 = vpop.f32.mrb[0].mxu0
    %v1007 = vadd.f32 %v379, %v1006
    %v1008 = vpop.f32.mrb[0].mxu0
    %v1009 = vadd.f32 %v379, %v1008
    %1010 = vmatprep.mubr.bf16.mxu0 0
    %1011 = vmatmul.mubr.bf16.gmra.mrb[0].mxu0 %v729
    %v1012 = vpop.f32.mrb[0].mxu0
    %v1013 = vadd.f32 %v384, %v1012
    %v1014 = vpop.f32.mrb[0].mxu0
    %v1015 = vadd.f32 %v384, %v1014
    %v1016 = vpop.f32.mrb[0].mxu0
    %v1017 = vadd.f32 %v389, %v1016
    %v1018 = vpop.f32.mrb[0].mxu0
    %v1019 = vadd.f32 %v389, %v1018
    %1020 = vmatprep.mubr.bf16.mxu0 0
    %1021 = vmatmul.mubr.bf16.gmra.mrb[0].mxu0 %v732
    %v1022 = vpop.f32.mrb[0].mxu0
    %v1023 = vadd.f32 %v394, %v1022
    %v1024 = vpop.f32.mrb[0].mxu0
    %v1025 = vadd.f32 %v394, %v1024
    %v1026 = vpop.f32.mrb[0].mxu0
    %v1027 = vadd.f32 %v399, %v1026
    %v1028 = vpop.f32.mrb[0].mxu0
    %v1029 = vadd.f32 %v399, %v1028
    %1030 = vmatprep.mubr.bf16.mxu0 0
    %1031 = vmatmul.mubr.bf16.gmra.mrb[0].mxu0 %v735
    %v1032 = vpop.f32.mrb[0].mxu0
    %v1033 = vadd.f32 %v404, %v1032
    %v1034 = vpop.f32.mrb[0].mxu0
    %v1035 = vadd.f32 %v404, %v1034
    %v1036 = vpop.f32.mrb[0].mxu0
    %v1037 = vadd.f32 %v409, %v1036
    %v1038 = vpop.f32.mrb[0].mxu0
    %v1039 = vadd.f32 %v409, %v1038
    %1040 = vmatprep.mubr.bf16.mxu0 0
    %1041 = vmatmul.mubr.bf16.gmra.mrb[0].mxu0 %v738
    %v1042 = vpop.f32.mrb[0].mxu0
    %v1043 = vadd.f32 %v414, %v1042
    %v1044 = vpop.f32.mrb[0].mxu0
    %v1045 = vadd.f32 %v414, %v1044
    %v1046 = vpop.f32.mrb[0].mxu0
    %v1047 = vadd.f32 %v419, %v1046
    %v1048 = vpop.f32.mrb[0].mxu0
    %v1049 = vadd.f32 %v419, %v1048
    %1050 = vmatprep.mubr.bf16.mxu0 0
    %1051 = vmatmul.mubr.bf16.gmra.mrb[0].mxu0 %v741
    %v1052 = vpop.f32.mrb[0].mxu0
    %v1053 = vadd.f32 %v424, %v1052
    %v1054 = vpop.f32.mrb[0].mxu0
    %v1055 = vadd.f32 %v424, %v1054
    %v1056 = vpop.f32.mrb[0].mxu0
    %v1057 = vadd.f32 %v429, %v1056
    %v1058 = vpop.f32.mrb[0].mxu0
    %v1059 = vadd.f32 %v429, %v1058
    %1060 = vmatprep.mubr.bf16.mxu0 0
    %1061 = vmatmul.mubr.bf16.gmra.mrb[0].mxu0 %v744
    %v1062 = vpop.f32.mrb[0].mxu0
    %v1063 = vadd.f32 %v434, %v1062
    %v1064 = vpop.f32.mrb[0].mxu0
    %v1065 = vadd.f32 %v434, %v1064
    %v1066 = vpop.f32.mrb[0].mxu0
    %v1067 = vadd.f32 %v439, %v1066
    %v1068 = vpop.f32.mrb[0].mxu0
    %v1069 = vadd.f32 %v439, %v1068
    %1070 = vmatprep.mubr.bf16.mxu0 0
    %1071 = vmatmul.mubr.bf16.gmra.mrb[0].mxu0 %v747
    %v1072 = vpop.f32.mrb[0].mxu0
    %v1073 = vadd.f32 %v444, %v1072
    %v1074 = vpop.f32.mrb[0].mxu0
    %v1075 = vadd.f32 %v444, %v1074
    %v1076 = vpop.f32.mrb[0].mxu0
    %v1077 = vadd.f32 %v449, %v1076
    %v1078 = vpop.f32.mrb[0].mxu0
    %v1079 = vadd.f32 %v449, %v1078
    %1080 = vmatprep.mubr.bf16.mxu0 0
    %1081 = vmatmul.mubr.bf16.gmra.mrb[0].mxu0 %v750
    %v1082 = vpop.f32.mrb[0].mxu0
    %v1083 = vadd.f32 %v454, %v1082
    %v1084 = vpop.f32.mrb[0].mxu0
    %v1085 = vadd.f32 %v454, %v1084
    %v1086 = vpop.f32.mrb[0].mxu0
    %v1087 = vadd.f32 %v459, %v1086
    %v1088 = vpop.f32.mrb[0].mxu0
    %v1089 = vadd.f32 %v459, %v1088
    %1090 = vmatprep.mubr.bf16.mxu0 0
    %1091 = vmatmul.mubr.bf16.gmra.mrb[0].mxu0 %v753
    %v1092 = vpop.f32.mrb[0].mxu0
    %v1093 = vadd.f32 %v464, %v1092
    %v1094 = vpop.f32.mrb[0].mxu0
    %v1095 = vadd.f32 %v464, %v1094
    %v1096 = vpop.f32.mrb[0].mxu0
    %v1097 = vadd.f32 %v469, %v1096
    %v1098 = vpop.f32.mrb[0].mxu0
    %v1099 = vadd.f32 %v469, %v1098
    %1100 = vmatprep.mubr.bf16.mxu0 0
    %1101 = vmatmul.mubr.bf16.gmra.mrb[0].mxu0 %v756
    %v1102 = vpop.f32.mrb[0].mxu0
    %v1103 = vadd.f32 %v474, %v1102
    %v1104 = vpop.f32.mrb[0].mxu0
    %v1105 = vadd.f32 %v474, %v1104
    %v1106 = vpop.f32.mrb[0].mxu0
    %v1107 = vadd.f32 %v479, %v1106
    %v1108 = vpop.f32.mrb[0].mxu0
    %v1109 = vadd.f32 %v479, %v1108
    %1110 = vdwg.mxu0
    %v1111 = vmax.f32 %v793, 0.0
    %v1112 = vmax.f32 %v795, 0.0
    %v1113 = vmax.f32 %v797, 0.0
    %v1114 = vmax.f32 %v799, 0.0
    %v1115 = vmax.f32 %v803, 0.0
    %v1116 = vmax.f32 %v805, 0.0
    %v1117 = vmax.f32 %v807, 0.0
    %v1118 = vmax.f32 %v809, 0.0
    %v1119 = vmax.f32 %v813, 0.0
    %v1120 = vmax.f32 %v815, 0.0
    %v1121 = vmax.f32 %v817, 0.0
    %v1122 = vmax.f32 %v819, 0.0
    %v1123 = vmax.f32 %v823, 0.0
    %v1124 = vmax.f32 %v825, 0.0
    %v1125 = vmax.f32 %v827, 0.0
    %v1126 = vmax.f32 %v829, 0.0
    %v1127 = vmax.f32 %v833, 0.0
    %v1128 = vmax.f32 %v835, 0.0
    %v1129 = vmax.f32 %v837, 0.0
    %v1130 = vmax.f32 %v839, 0.0
    %v1131 = vmax.f32 %v843, 0.0
    %v1132 = vmax.f32 %v845, 0.0
    %v1133 = vmax.f32 %v847, 0.0
    %v1134 = vmax.f32 %v849, 0.0
    %v1135 = vmax.f32 %v853, 0.0
    %v1136 = vmax.f32 %v855, 0.0
    %v1137 = vmax.f32 %v857, 0.0
    %v1138 = vmax.f32 %v859, 0.0
    %v1139 = vmax.f32 %v863, 0.0
    %v1140 = vmax.f32 %v865, 0.0
    %v1141 = vmax.f32 %v867, 0.0
    %v1142 = vmax.f32 %v869, 0.0
    %v1143 = vmax.f32 %v873, 0.0
    %v1144 = vmax.f32 %v875, 0.0
    %v1145 = vmax.f32 %v877, 0.0
    %v1146 = vmax.f32 %v879, 0.0
    %v1147 = vmax.f32 %v883, 0.0
    %v1148 = vmax.f32 %v885, 0.0
    %v1149 = vmax.f32 %v887, 0.0
    %v1150 = vmax.f32 %v889, 0.0
    %v1151 = vmax.f32 %v893, 0.0
    %v1152 = vmax.f32 %v895, 0.0
    %v1153 = vmax.f32 %v897, 0.0
    %v1154 = vmax.f32 %v899, 0.0
    %v1155 = vmax.f32 %v903, 0.0
    %v1156 = vmax.f32 %v905, 0.0
    %v1157 = vmax.f32 %v907, 0.0
    %v1158 = vmax.f32 %v909, 0.0
    %v1159 = vmax.f32 %v913, 0.0
    %v1160 = vmax.f32 %v915, 0.0
    %v1161 = vmax.f32 %v917, 0.0
    %v1162 = vmax.f32 %v919, 0.0
    %v1163 = vmax.f32 %v923, 0.0
    %v1164 = vmax.f32 %v925, 0.0
    %v1165 = vmax.f32 %v927, 0.0
    %v1166 = vmax.f32 %v929, 0.0
    %v1167 = vmax.f32 %v933, 0.0
    %v1168 = vmax.f32 %v935, 0.0
    %v1169 = vmax.f32 %v937, 0.0
    %v1170 = vmax.f32 %v939, 0.0
    %v1171 = vmax.f32 %v943, 0.0
    %v1172 = vmax.f32 %v945, 0.0
    %v1173 = vmax.f32 %v947, 0.0
    %v1174 = vmax.f32 %v949, 0.0
    %v1175 = vmax.f32 %v953, 0.0
    %v1176 = vmax.f32 %v955, 0.0
    %v1177 = vmax.f32 %v957, 0.0
    %v1178 = vmax.f32 %v959, 0.0
    %v1179 = vmax.f32 %v963, 0.0
    %v1180 = vmax.f32 %v965, 0.0
    %v1181 = vmax.f32 %v967, 0.0
    %v1182 = vmax.f32 %v969, 0.0
    %v1183 = vmax.f32 %v973, 0.0
    %v1184 = vmax.f32 %v975, 0.0
    %v1185 = vmax.f32 %v977, 0.0
    %v1186 = vmax.f32 %v979, 0.0
    %v1187 = vmax.f32 %v983, 0.0
    %v1188 = vmax.f32 %v985, 0.0
    %v1189 = vmax.f32 %v987, 0.0
    %v1190 = vmax.f32 %v989, 0.0
    %v1191 = vmax.f32 %v993, 0.0
    %v1192 = vmax.f32 %v995, 0.0
    %v1193 = vmax.f32 %v997, 0.0
    %v1194 = vmax.f32 %v999, 0.0
    %v1195 = vmax.f32 %v1003, 0.0
    %v1196 = vmax.f32 %v1005, 0.0
    %v1197 = vmax.f32 %v1007, 0.0
    %v1198 = vmax.f32 %v1009, 0.0
    %v1199 = vmax.f32 %v1013, 0.0
    %v1200 = vmax.f32 %v1015, 0.0
    %v1201 = vmax.f32 %v1017, 0.0
    %v1202 = vmax.f32 %v1019, 0.0
    %v1203 = vmax.f32 %v1023, 0.0
    %v1204 = vmax.f32 %v1025, 0.0
    %v1205 = vmax.f32 %v1027, 0.0
    %v1206 = vmax.f32 %v1029, 0.0
    %v1207 = vmax.f32 %v1033, 0.0
    %v1208 = vmax.f32 %v1035, 0.0
    %v1209 = vmax.f32 %v1037, 0.0
    %v1210 = vmax.f32 %v1039, 0.0
    %v1211 = vmax.f32 %v1043, 0.0
    %v1212 = vmax.f32 %v1045, 0.0
    %v1213 = vmax.f32 %v1047, 0.0
    %v1214 = vmax.f32 %v1049, 0.0
    %v1215 = vmax.f32 %v1053, 0.0
    %v1216 = vmax.f32 %v1055, 0.0
    %v1217 = vmax.f32 %v1057, 0.0
    %v1218 = vmax.f32 %v1059, 0.0
    %v1219 = vmax.f32 %v1063, 0.0
    %v1220 = vmax.f32 %v1065, 0.0
    %v1221 = vmax.f32 %v1067, 0.0
    %v1222 = vmax.f32 %v1069, 0.0
    %v1223 = vmax.f32 %v1073, 0.0
    %v1224 = vmax.f32 %v1075, 0.0
    %v1225 = vmax.f32 %v1077, 0.0
    %v1226 = vmax.f32 %v1079, 0.0
    %v1227 = vmax.f32 %v1083, 0.0
    %v1228 = vmax.f32 %v1085, 0.0
    %v1229 = vmax.f32 %v1087, 0.0
    %v1230 = vmax.f32 %v1089, 0.0
    %v1231 = vmax.f32 %v1093, 0.0
    %v1232 = vmax.f32 %v1095, 0.0
    %v1233 = vmax.f32 %v1097, 0.0
    %v1234 = vmax.f32 %v1099, 0.0
    %v1235 = vmax.f32 %v1103, 0.0
    %v1236 = vmax.f32 %v1105, 0.0
    %v1237 = vmax.f32 %v1107, 0.0
    %v1238 = vmax.f32 %v1109, 0.0
    %v1239 = vld [vmem:[%s3] sm:$0xff]
    %v1240 = vld [vmem:[%s3 + $0x8] sm:$0xff]
    %v1241 = vld [vmem:[%s3 + $0x10] sm:$0xff]
    %v1242 = vld [vmem:[%s3 + $0x18] sm:$0xff]
    %v1243 = vld [vmem:[%s3 + $0x20] sm:$0xff]
    %v1244 = vld [vmem:[%s3 + $0x28] sm:$0xff]
    %v1245 = vld [vmem:[%s3 + $0x30] sm:$0xff]
    %v1246 = vld [vmem:[%s3 + $0x38] sm:$0xff]
    %v1247 = vld [vmem:[%s3 + $0x40] sm:$0xff]
    %v1248 = vld [vmem:[%s3 + $0x48] sm:$0xff]
    %v1249 = vld [vmem:[%s3 + $0x50] sm:$0xff]
    %v1250 = vld [vmem:[%s3 + $0x58] sm:$0xff]
    %v1251 = vld [vmem:[%s3 + $0x60] sm:$0xff]
    %v1252 = vld [vmem:[%s3 + $0x68] sm:$0xff]
    %v1253 = vld [vmem:[%s3 + $0x70] sm:$0xff]
    %v1254 = vld [vmem:[%s3 + $0x78] sm:$0xff]
    %v1255 = vld [vmem:[%s3 + $0x80] sm:$0xff]
    %v1256 = vld [vmem:[%s3 + $0x88] sm:$0xff]
    %v1257 = vld [vmem:[%s3 + $0x90] sm:$0xff]
    %v1258 = vld [vmem:[%s3 + $0x98] sm:$0xff]
    %v1259 = vld [vmem:[%s3 + $0xa0] sm:$0xff]
    %v1260 = vld [vmem:[%s3 + $0xa8] sm:$0xff]
    %v1261 = vld [vmem:[%s3 + $0xb0] sm:$0xff]
    %v1262 = vld [vmem:[%s3 + $0xb8] sm:$0xff]
    %v1263 = vld [vmem:[%s3 + $0xc0] sm:$0xff]
    %v1264 = vld [vmem:[%s3 + $0xc8] sm:$0xff]
    %v1265 = vld [vmem:[%s3 + $0xd0] sm:$0xff]
    %v1266 = vld [vmem:[%s3 + $0xd8] sm:$0xff]
    %v1267 = vld [vmem:[%s3 + $0xe0] sm:$0xff]
    %v1268 = vld [vmem:[%s3 + $0xe8] sm:$0xff]
    %v1269 = vld [vmem:[%s3 + $0xf0] sm:$0xff]
    %v1270 = vld [vmem:[%s3 + $0xf8] sm:$0xff]
    %v1271 = vld [vmem:[%s3 + $0x100] sm:$0xff]
    %v1272 = vld [vmem:[%s3 + $0x108] sm:$0xff]
    %v1273 = vld [vmem:[%s3 + $0x110] sm:$0xff]
    %v1274 = vld [vmem:[%s3 + $0x118] sm:$0xff]
    %v1275 = vld [vmem:[%s3 + $0x120] sm:$0xff]
    %v1276 = vld [vmem:[%s3 + $0x128] sm:$0xff]
    %v1277 = vld [vmem:[%s3 + $0x130] sm:$0xff]
    %v1278 = vld [vmem:[%s3 + $0x138] sm:$0xff]
    %v1279 = vld [vmem:[%s3 + $0x140] sm:$0xff]
    %v1280 = vld [vmem:[%s3 + $0x148] sm:$0xff]
    %v1281 = vld [vmem:[%s3 + $0x150] sm:$0xff]
    %v1282 = vld [vmem:[%s3 + $0x158] sm:$0xff]
    %v1283 = vld [vmem:[%s3 + $0x160] sm:$0xff]
    %v1284 = vld [vmem:[%s3 + $0x168] sm:$0xff]
    %v1285 = vld [vmem:[%s3 + $0x170] sm:$0xff]
    %v1286 = vld [vmem:[%s3 + $0x178] sm:$0xff]
    %v1287 = vld [vmem:[%s3 + $0x180] sm:$0xff]
    %v1288 = vld [vmem:[%s3 + $0x188] sm:$0xff]
    %v1289 = vld [vmem:[%s3 + $0x190] sm:$0xff]
    %v1290 = vld [vmem:[%s3 + $0x198] sm:$0xff]
    %v1291 = vld [vmem:[%s3 + $0x1a0] sm:$0xff]
    %v1292 = vld [vmem:[%s3 + $0x1a8] sm:$0xff]
    %v1293 = vld [vmem:[%s3 + $0x1b0] sm:$0xff]
    %v1294 = vld [vmem:[%s3 + $0x1b8] sm:$0xff]
    %v1295 = vld [vmem:[%s3 + $0x1c0] sm:$0xff]
    %v1296 = vld [vmem:[%s3 + $0x1c8] sm:$0xff]
    %v1297 = vld [vmem:[%s3 + $0x1d0] sm:$0xff]
    %v1298 = vld [vmem:[%s3 + $0x1d8] sm:$0xff]
    %v1299 = vld [vmem:[%s3 + $0x1e0] sm:$0xff]
    %v1300 = vld [vmem:[%s3 + $0x1e8] sm:$0xff]
    %v1301 = vld [vmem:[%s3 + $0x1f0] sm:$0xff]
    %v1302 = vld [vmem:[%s3 + $0x1f8] sm:$0xff]
    %v1303 = vld [vmem:[%s3 + $0x200] sm:$0xff]
    %v1304 = vld [vmem:[%s3 + $0x208] sm:$0xff]
    %v1305 = vld [vmem:[%s3 + $0x210] sm:$0xff]
    %v1306 = vld [vmem:[%s3 + $0x218] sm:$0xff]
    %v1307 = vld [vmem:[%s3 + $0x220] sm:$0xff]
    %v1308 = vld [vmem:[%s3 + $0x228] sm:$0xff]
    %v1309 = vld [vmem:[%s3 + $0x230] sm:$0xff]
    %v1310 = vld [vmem:[%s3 + $0x238] sm:$0xff]
    %v1311 = vld [vmem:[%s3 + $0x240] sm:$0xff]
    %v1312 = vld [vmem:[%s3 + $0x248] sm:$0xff]
    %v1313 = vld [vmem:[%s3 + $0x250] sm:$0xff]
    %v1314 = vld [vmem:[%s3 + $0x258] sm:$0xff]
    %v1315 = vld [vmem:[%s3 + $0x260] sm:$0xff]
    %v1316 = vld [vmem:[%s3 + $0x268] sm:$0xff]
    %v1317 = vld [vmem:[%s3 + $0x270] sm:$0xff]
    %v1318 = vld [vmem:[%s3 + $0x278] sm:$0xff]
    %v1319 = vld [vmem:[%s3 + $0x280] sm:$0xff]
    %v1320 = vld [vmem:[%s3 + $0x288] sm:$0xff]
    %v1321 = vld [vmem:[%s3 + $0x290] sm:$0xff]
    %v1322 = vld [vmem:[%s3 + $0x298] sm:$0xff]
    %v1323 = vld [vmem:[%s3 + $0x2a0] sm:$0xff]
    %v1324 = vld [vmem:[%s3 + $0x2a8] sm:$0xff]
    %v1325 = vld [vmem:[%s3 + $0x2b0] sm:$0xff]
    %v1326 = vld [vmem:[%s3 + $0x2b8] sm:$0xff]
    %v1327 = vld [vmem:[%s3 + $0x2c0] sm:$0xff]
    %v1328 = vld [vmem:[%s3 + $0x2c8] sm:$0xff]
    %v1329 = vld [vmem:[%s3 + $0x2d0] sm:$0xff]
    %v1330 = vld [vmem:[%s3 + $0x2d8] sm:$0xff]
    %v1331 = vld [vmem:[%s3 + $0x2e0] sm:$0xff]
    %v1332 = vld [vmem:[%s3 + $0x2e8] sm:$0xff]
    %v1333 = vld [vmem:[%s3 + $0x2f0] sm:$0xff]
    %v1334 = vld [vmem:[%s3 + $0x2f8] sm:$0xff]
    %v1335 = vpack.c.bf16 %v1113, %v1111
    %v1336 = vpack.c.bf16 %v1114, %v1112
    %v1337 = vpack.c.bf16 %v1117, %v1115
    %v1338 = vpack.c.bf16 %v1118, %v1116
    %v1339 = vpack.c.bf16 %v1121, %v1119
    %v1340 = vpack.c.bf16 %v1122, %v1120
    %v1341 = vpack.c.bf16 %v1125, %v1123
    %v1342 = vpack.c.bf16 %v1126, %v1124
    %v1343 = vpack.c.bf16 %v1129, %v1127
    %v1344 = vpack.c.bf16 %v1130, %v1128
    %v1345 = vpack.c.bf16 %v1133, %v1131
    %v1346 = vpack.c.bf16 %v1134, %v1132
    %v1347 = vpack.c.bf16 %v1137, %v1135
    %v1348 = vpack.c.bf16 %v1138, %v1136
    %v1349 = vpack.c.bf16 %v1141, %v1139
    %v1350 = vpack.c.bf16 %v1142, %v1140
    %v1351 = vpack.c.bf16 %v1145, %v1143
    %v1352 = vpack.c.bf16 %v1146, %v1144
    %v1353 = vpack.c.bf16 %v1149, %v1147
    %v1354 = vpack.c.bf16 %v1150, %v1148
    %v1355 = vpack.c.bf16 %v1153, %v1151
    %v1356 = vpack.c.bf16 %v1154, %v1152
    %v1357 = vpack.c.bf16 %v1157, %v1155
    %v1358 = vpack.c.bf16 %v1158, %v1156
    %v1359 = vpack.c.bf16 %v1161, %v1159
    %v1360 = vpack.c.bf16 %v1162, %v1160
    %v1361 = vpack.c.bf16 %v1165, %v1163
    %v1362 = vpack.c.bf16 %v1166, %v1164
    %v1363 = vpack.c.bf16 %v1169, %v1167
    %v1364 = vpack.c.bf16 %v1170, %v1168
    %v1365 = vpack.c.bf16 %v1173, %v1171
    %v1366 = vpack.c.bf16 %v1174, %v1172
    %v1367 = vpack.c.bf16 %v1177, %v1175
    %v1368 = vpack.c.bf16 %v1178, %v1176
    %v1369 = vpack.c.bf16 %v1181, %v1179
    %v1370 = vpack.c.bf16 %v1182, %v1180
    %v1371 = vpack.c.bf16 %v1185, %v1183
    %v1372 = vpack.c.bf16 %v1186, %v1184
    %v1373 = vpack.c.bf16 %v1189, %v1187
    %v1374 = vpack.c.bf16 %v1190, %v1188
    %v1375 = vpack.c.bf16 %v1193, %v1191
    %v1376 = vpack.c.bf16 %v1194, %v1192
    %v1377 = vpack.c.bf16 %v1197, %v1195
    %v1378 = vpack.c.bf16 %v1198, %v1196
    %v1379 = vpack.c.bf16 %v1201, %v1199
    %v1380 = vpack.c.bf16 %v1202, %v1200
    %v1381 = vpack.c.bf16 %v1205, %v1203
    %v1382 = vpack.c.bf16 %v1206, %v1204
    %v1383 = vpack.c.bf16 %v1209, %v1207
    %v1384 = vpack.c.bf16 %v1210, %v1208
    %v1385 = vpack.c.bf16 %v1213, %v1211
    %v1386 = vpack.c.bf16 %v1214, %v1212
    %v1387 = vpack.c.bf16 %v1217, %v1215
    %v1388 = vpack.c.bf16 %v1218, %v1216
    %v1389 = vpack.c.bf16 %v1221, %v1219
    %v1390 = vpack.c.bf16 %v1222, %v1220
    %v1391 = vpack.c.bf16 %v1225, %v1223
    %v1392 = vpack.c.bf16 %v1226, %v1224
    %v1393 = vpack.c.bf16 %v1229, %v1227
    %v1394 = vpack.c.bf16 %v1230, %v1228
    %v1395 = vpack.c.bf16 %v1233, %v1231
    %v1396 = vpack.c.bf16 %v1234, %v1232
    %v1397 = vpack.c.bf16 %v1237, %v1235
    %v1398 = vpack.c.bf16 %v1238, %v1236
    %v1399 = vld [vmem:[%s4] sm:$0xff]
    %v1400 = vld [vmem:[%s4 + $0x8] sm:$0xff]
    %v1401 = vld [vmem:[%s4 + $0x10] sm:$0xff]
    %v1402 = vld [vmem:[%s4 + $0x18] sm:$0xff]
    %v1403 = vld [vmem:[%s4 + $0x20] sm:$0xff]
    %v1404 = vld [vmem:[%s4 + $0x28] sm:$0xff]
    %v1405 = vld [vmem:[%s4 + $0x30] sm:$0xff]
    %v1406 = vld [vmem:[%s4 + $0x38] sm:$0xff]
    %v1407 = vld [vmem:[%s4 + $0x40] sm:$0xff]
    %v1408 = vld [vmem:[%s4 + $0x48] sm:$0xff]
    %v1409 = vld [vmem:[%s4 + $0x50] sm:$0xff]
    %v1410 = vld [vmem:[%s4 + $0x58] sm:$0xff]
    %v1411 = vld [vmem:[%s4 + $0x60] sm:$0xff]
    %v1412 = vld [vmem:[%s4 + $0x68] sm:$0xff]
    %v1413 = vld [vmem:[%s4 + $0x70] sm:$0xff]
    %v1414 = vld [vmem:[%s4 + $0x78] sm:$0xff]
    %v1415 = vld [vmem:[%s4 + $0x80] sm:$0xff]
    %v1416 = vld [vmem:[%s4 + $0x88] sm:$0xff]
    %v1417 = vld [vmem:[%s4 + $0x90] sm:$0xff]
    %v1418 = vld [vmem:[%s4 + $0x98] sm:$0xff]
    %v1419 = vld [vmem:[%s4 + $0xa0] sm:$0xff]
    %v1420 = vld [vmem:[%s4 + $0xa8] sm:$0xff]
    %v1421 = vld [vmem:[%s4 + $0xb0] sm:$0xff]
    %v1422 = vld [vmem:[%s4 + $0xb8] sm:$0xff]
    %v1423 = vld [vmem:[%s4 + $0xc0] sm:$0xff]
    %v1424 = vld [vmem:[%s4 + $0xc8] sm:$0xff]
    %v1425 = vld [vmem:[%s4 + $0xd0] sm:$0xff]
    %v1426 = vld [vmem:[%s4 + $0xd8] sm:$0xff]
    %v1427 = vld [vmem:[%s4 + $0xe0] sm:$0xff]
    %v1428 = vld [vmem:[%s4 + $0xe8] sm:$0xff]
    %v1429 = vld [vmem:[%s4 + $0xf0] sm:$0xff]
    %v1430 = vld [vmem:[%s4 + $0xf8] sm:$0xff]
    %v1431 = vld [vmem:[%s4 + $0x100] sm:$0xff]
    %v1432 = vld [vmem:[%s4 + $0x108] sm:$0xff]
    %v1433 = vld [vmem:[%s4 + $0x110] sm:$0xff]
    %v1434 = vld [vmem:[%s4 + $0x118] sm:$0xff]
    %v1435 = vld [vmem:[%s4 + $0x120] sm:$0xff]
    %v1436 = vld [vmem:[%s4 + $0x128] sm:$0xff]
    %v1437 = vld [vmem:[%s4 + $0x130] sm:$0xff]
    %v1438 = vld [vmem:[%s4 + $0x138] sm:$0xff]
    %v1439 = vld [vmem:[%s4 + $0x140] sm:$0xff]
    %v1440 = vld [vmem:[%s4 + $0x148] sm:$0xff]
    %v1441 = vld [vmem:[%s4 + $0x150] sm:$0xff]
    %v1442 = vld [vmem:[%s4 + $0x158] sm:$0xff]
    %v1443 = vld [vmem:[%s4 + $0x160] sm:$0xff]
    %v1444 = vld [vmem:[%s4 + $0x168] sm:$0xff]
    %v1445 = vld [vmem:[%s4 + $0x170] sm:$0xff]
    %v1446 = vld [vmem:[%s4 + $0x178] sm:$0xff]
    %1448 = vset.pattern.permute.xlu0 0
    %1449 = vperm.xlu0 %1448, %v1399
    %v1450 = vpop.permute.xlu0 %1449
    %1453 = vset.pattern.permute.xlu0 0
    %1454 = vperm.xlu0 %1453, %v1400
    %v1455 = vpop.permute.xlu0 %1454
    %1458 = vset.pattern.permute.xlu0 0
    %1459 = vperm.xlu0 %1458, %v1401
    %v1460 = vpop.permute.xlu0 %1459
    %1463 = vset.pattern.permute.xlu0 0
    %1464 = vperm.xlu0 %1463, %v1402
    %v1465 = vpop.permute.xlu0 %1464
    %1468 = vset.pattern.permute.xlu0 0
    %1469 = vperm.xlu0 %1468, %v1403
    %v1470 = vpop.permute.xlu0 %1469
    %1473 = vset.pattern.permute.xlu0 0
    %1474 = vperm.xlu0 %1473, %v1404
    %v1475 = vpop.permute.xlu0 %1474
    %1478 = vset.pattern.permute.xlu0 0
    %1479 = vperm.xlu0 %1478, %v1405
    %v1480 = vpop.permute.xlu0 %1479
    %1483 = vset.pattern.permute.xlu0 0
    %1484 = vperm.xlu0 %1483, %v1406
    %v1485 = vpop.permute.xlu0 %1484
    %1488 = vset.pattern.permute.xlu0 0
    %1489 = vperm.xlu0 %1488, %v1407
    %v1490 = vpop.permute.xlu0 %1489
    %1493 = vset.pattern.permute.xlu0 0
    %1494 = vperm.xlu0 %1493, %v1408
    %v1495 = vpop.permute.xlu0 %1494
    %1498 = vset.pattern.permute.xlu0 0
    %1499 = vperm.xlu0 %1498, %v1409
    %v1500 = vpop.permute.xlu0 %1499
    %1503 = vset.pattern.permute.xlu0 0
    %1504 = vperm.xlu0 %1503, %v1410
    %v1505 = vpop.permute.xlu0 %1504
    %1508 = vset.pattern.permute.xlu0 0
    %1509 = vperm.xlu0 %1508, %v1411
    %v1510 = vpop.permute.xlu0 %1509
    %1513 = vset.pattern.permute.xlu0 0
    %1514 = vperm.xlu0 %1513, %v1412
    %v1515 = vpop.permute.xlu0 %1514
    %1518 = vset.pattern.permute.xlu0 0
    %1519 = vperm.xlu0 %1518, %v1413
    %v1520 = vpop.permute.xlu0 %1519
    %1523 = vset.pattern.permute.xlu0 0
    %1524 = vperm.xlu0 %1523, %v1414
    %v1525 = vpop.permute.xlu0 %1524
    %1528 = vset.pattern.permute.xlu0 0
    %1529 = vperm.xlu0 %1528, %v1415
    %v1530 = vpop.permute.xlu0 %1529
    %1533 = vset.pattern.permute.xlu0 0
    %1534 = vperm.xlu0 %1533, %v1416
    %v1535 = vpop.permute.xlu0 %1534
    %1538 = vset.pattern.permute.xlu0 0
    %1539 = vperm.xlu0 %1538, %v1417
    %v1540 = vpop.permute.xlu0 %1539
    %1543 = vset.pattern.permute.xlu0 0
    %1544 = vperm.xlu0 %1543, %v1418
    %v1545 = vpop.permute.xlu0 %1544
    %1548 = vset.pattern.permute.xlu0 0
    %1549 = vperm.xlu0 %1548, %v1419
    %v1550 = vpop.permute.xlu0 %1549
    %1553 = vset.pattern.permute.xlu0 0
    %1554 = vperm.xlu0 %1553, %v1420
    %v1555 = vpop.permute.xlu0 %1554
    %1558 = vset.pattern.permute.xlu0 0
    %1559 = vperm.xlu0 %1558, %v1421
    %v1560 = vpop.permute.xlu0 %1559
    %1563 = vset.pattern.permute.xlu0 0
    %1564 = vperm.xlu0 %1563, %v1422
    %v1565 = vpop.permute.xlu0 %1564
    %1568 = vset.pattern.permute.xlu0 0
    %1569 = vperm.xlu0 %1568, %v1423
    %v1570 = vpop.permute.xlu0 %1569
    %1573 = vset.pattern.permute.xlu0 0
    %1574 = vperm.xlu0 %1573, %v1424
    %v1575 = vpop.permute.xlu0 %1574
    %1578 = vset.pattern.permute.xlu0 0
    %1579 = vperm.xlu0 %1578, %v1425
    %v1580 = vpop.permute.xlu0 %1579
    %1583 = vset.pattern.permute.xlu0 0
    %1584 = vperm.xlu0 %1583, %v1426
    %v1585 = vpop.permute.xlu0 %1584
    %1588 = vset.pattern.permute.xlu0 0
    %1589 = vperm.xlu0 %1588, %v1427
    %v1590 = vpop.permute.xlu0 %1589
    %1593 = vset.pattern.permute.xlu0 0
    %1594 = vperm.xlu0 %1593, %v1428
    %v1595 = vpop.permute.xlu0 %1594
    %1598 = vset.pattern.permute.xlu0 0
    %1599 = vperm.xlu0 %1598, %v1429
    %v1600 = vpop.permute.xlu0 %1599
    %1603 = vset.pattern.permute.xlu0 0
    %1604 = vperm.xlu0 %1603, %v1430
    %v1605 = vpop.permute.xlu0 %1604
    %1608 = vset.pattern.permute.xlu0 0
    %1609 = vperm.xlu0 %1608, %v1431
    %v1610 = vpop.permute.xlu0 %1609
    %1613 = vset.pattern.permute.xlu0 0
    %1614 = vperm.xlu0 %1613, %v1432
    %v1615 = vpop.permute.xlu0 %1614
    %1618 = vset.pattern.permute.xlu0 0
    %1619 = vperm.xlu0 %1618, %v1433
    %v1620 = vpop.permute.xlu0 %1619
    %1623 = vset.pattern.permute.xlu0 0
    %1624 = vperm.xlu0 %1623, %v1434
    %v1625 = vpop.permute.xlu0 %1624
    %1628 = vset.pattern.permute.xlu0 0
    %1629 = vperm.xlu0 %1628, %v1435
    %v1630 = vpop.permute.xlu0 %1629
    %1633 = vset.pattern.permute.xlu0 0
    %1634 = vperm.xlu0 %1633, %v1436
    %v1635 = vpop.permute.xlu0 %1634
    %1638 = vset.pattern.permute.xlu0 0
    %1639 = vperm.xlu0 %1638, %v1437
    %v1640 = vpop.permute.xlu0 %1639
    %1643 = vset.pattern.permute.xlu0 0
    %1644 = vperm.xlu0 %1643, %v1438
    %v1645 = vpop.permute.xlu0 %1644
    %1648 = vset.pattern.permute.xlu0 0
    %1649 = vperm.xlu0 %1648, %v1439
    %v1650 = vpop.permute.xlu0 %1649
    %1653 = vset.pattern.permute.xlu0 0
    %1654 = vperm.xlu0 %1653, %v1440
    %v1655 = vpop.permute.xlu0 %1654
    %1658 = vset.pattern.permute.xlu0 0
    %1659 = vperm.xlu0 %1658, %v1441
    %v1660 = vpop.permute.xlu0 %1659
    %1663 = vset.pattern.permute.xlu0 0
    %1664 = vperm.xlu0 %1663, %v1442
    %v1665 = vpop.permute.xlu0 %1664
    %1668 = vset.pattern.permute.xlu0 0
    %1669 = vperm.xlu0 %1668, %v1443
    %v1670 = vpop.permute.xlu0 %1669
    %1673 = vset.pattern.permute.xlu0 0
    %1674 = vperm.xlu0 %1673, %v1444
    %v1675 = vpop.permute.xlu0 %1674
    %1678 = vset.pattern.permute.xlu0 0
    %1679 = vperm.xlu0 %1678, %v1445
    %v1680 = vpop.permute.xlu0 %1679
    %1683 = vset.pattern.permute.xlu0 0
    %1684 = vperm.xlu0 %1683, %v1446
    %v1685 = vpop.permute.xlu0 %1684
    %v1783 = vunpack.c.l.b16 %v1239
    %v1784 = vunpack.c.h.b16 %v1239
    %v1785 = vunpack.c.l.b16 %v1240
    %v1786 = vunpack.c.h.b16 %v1240
    %v1787 = vunpack.c.l.b16 %v1241
    %v1788 = vunpack.c.h.b16 %v1241
    %v1789 = vunpack.c.l.b16 %v1242
    %v1790 = vunpack.c.h.b16 %v1242
    %v1791 = vunpack.c.l.b16 %v1243
    %v1792 = vunpack.c.h.b16 %v1243
    %v1793 = vunpack.c.l.b16 %v1244
    %v1794 = vunpack.c.h.b16 %v1244
    %v1795 = vunpack.c.l.b16 %v1245
    %v1796 = vunpack.c.h.b16 %v1245
    %v1797 = vunpack.c.l.b16 %v1246
    %v1798 = vunpack.c.h.b16 %v1246
    %v1799 = vunpack.c.l.b16 %v1247
    %v1800 = vunpack.c.h.b16 %v1247
    %v1801 = vunpack.c.l.b16 %v1248
    %v1802 = vunpack.c.h.b16 %v1248
    %v1803 = vunpack.c.l.b16 %v1249
    %v1804 = vunpack.c.h.b16 %v1249
    %v1805 = vunpack.c.l.b16 %v1250
    %v1806 = vunpack.c.h.b16 %v1250
    %v1807 = vunpack.c.l.b16 %v1251
    %v1808 = vunpack.c.h.b16 %v1251
    %v1809 = vunpack.c.l.b16 %v1252
    %v1810 = vunpack.c.h.b16 %v1252
    %v1811 = vunpack.c.l.b16 %v1253
    %v1812 = vunpack.c.h.b16 %v1253
    %v1813 = vunpack.c.l.b16 %v1254
    %v1814 = vunpack.c.h.b16 %v1254
    %v1815 = vunpack.c.l.b16 %v1255
    %v1816 = vunpack.c.h.b16 %v1255
    %v1817 = vunpack.c.l.b16 %v1256
    %v1818 = vunpack.c.h.b16 %v1256
    %v1819 = vunpack.c.l.b16 %v1257
    %v1820 = vunpack.c.h.b16 %v1257
    %v1821 = vunpack.c.l.b16 %v1258
    %v1822 = vunpack.c.h.b16 %v1258
    %v1823 = vunpack.c.l.b16 %v1259
    %v1824 = vunpack.c.h.b16 %v1259
    %v1825 = vunpack.c.l.b16 %v1260
    %v1826 = vunpack.c.h.b16 %v1260
    %v1827 = vunpack.c.l.b16 %v1261
    %v1828 = vunpack.c.h.b16 %v1261
    %v1829 = vunpack.c.l.b16 %v1262
    %v1830 = vunpack.c.h.b16 %v1262
    %v1831 = vunpack.c.l.b16 %v1263
    %v1832 = vunpack.c.h.b16 %v1263
    %v1833 = vunpack.c.l.b16 %v1264
    %v1834 = vunpack.c.h.b16 %v1264
    %v1835 = vunpack.c.l.b16 %v1265
    %v1836 = vunpack.c.h.b16 %v1265
    %v1837 = vunpack.c.l.b16 %v1266
    %v1838 = vunpack.c.h.b16 %v1266
    %v1839 = vunpack.c.l.b16 %v1267
    %v1840 = vunpack.c.h.b16 %v1267
    %v1841 = vunpack.c.l.b16 %v1268
    %v1842 = vunpack.c.h.b16 %v1268
    %v1843 = vunpack.c.l.b16 %v1269
    %v1844 = vunpack.c.h.b16 %v1269
    %v1845 = vunpack.c.l.b16 %v1270
    %v1846 = vunpack.c.h.b16 %v1270
    %v1847 = vunpack.c.l.b16 %v1271
    %v1848 = vunpack.c.h.b16 %v1271
    %v1849 = vunpack.c.l.b16 %v1272
    %v1850 = vunpack.c.h.b16 %v1272
    %v1851 = vunpack.c.l.b16 %v1273
    %v1852 = vunpack.c.h.b16 %v1273
    %v1853 = vunpack.c.l.b16 %v1274
    %v1854 = vunpack.c.h.b16 %v1274
    %v1855 = vunpack.c.l.b16 %v1275
    %v1856 = vunpack.c.h.b16 %v1275
    %v1857 = vunpack.c.l.b16 %v1276
    %v1858 = vunpack.c.h.b16 %v1276
    %v1859 = vunpack.c.l.b16 %v1277
    %v1860 = vunpack.c.h.b16 %v1277
    %v1861 = vunpack.c.l.b16 %v1278
    %v1862 = vunpack.c.h.b16 %v1278
    %v1863 = vunpack.c.l.b16 %v1279
    %v1864 = vunpack.c.h.b16 %v1279
    %v1865 = vunpack.c.l.b16 %v1280
    %v1866 = vunpack.c.h.b16 %v1280
    %v1867 = vunpack.c.l.b16 %v1281
    %v1868 = vunpack.c.h.b16 %v1281
    %v1869 = vunpack.c.l.b16 %v1282
    %v1870 = vunpack.c.h.b16 %v1282
    %v1871 = vunpack.c.l.b16 %v1283
    %v1872 = vunpack.c.h.b16 %v1283
    %v1873 = vunpack.c.l.b16 %v1284
    %v1874 = vunpack.c.h.b16 %v1284
    %v1875 = vunpack.c.l.b16 %v1285
    %v1876 = vunpack.c.h.b16 %v1285
    %v1877 = vunpack.c.l.b16 %v1286
    %v1878 = vunpack.c.h.b16 %v1286
    %v1879 = vunpack.c.l.b16 %v1287
    %v1880 = vunpack.c.h.b16 %v1287
    %v1881 = vunpack.c.l.b16 %v1288
    %v1882 = vunpack.c.h.b16 %v1288
    %v1883 = vunpack.c.l.b16 %v1289
    %v1884 = vunpack.c.h.b16 %v1289
    %v1885 = vunpack.c.l.b16 %v1290
    %v1886 = vunpack.c.h.b16 %v1290
    %v1887 = vunpack.c.l.b16 %v1291
    %v1888 = vunpack.c.h.b16 %v1291
    %v1889 = vunpack.c.l.b16 %v1292
    %v1890 = vunpack.c.h.b16 %v1292
    %v1891 = vunpack.c.l.b16 %v1293
    %v1892 = vunpack.c.h.b16 %v1293
    %v1893 = vunpack.c.l.b16 %v1294
    %v1894 = vunpack.c.h.b16 %v1294
    %v1895 = vunpack.c.l.b16 %v1295
    %v1896 = vunpack.c.h.b16 %v1295
    %v1897 = vunpack.c.l.b16 %v1296
    %v1898 = vunpack.c.h.b16 %v1296
    %v1899 = vunpack.c.l.b16 %v1297
    %v1900 = vunpack.c.h.b16 %v1297
    %v1901 = vunpack.c.l.b16 %v1298
    %v1902 = vunpack.c.h.b16 %v1298
    %v1903 = vunpack.c.l.b16 %v1299
    %v1904 = vunpack.c.h.b16 %v1299
    %v1905 = vunpack.c.l.b16 %v1300
    %v1906 = vunpack.c.h.b16 %v1300
    %v1907 = vunpack.c.l.b16 %v1301
    %v1908 = vunpack.c.h.b16 %v1301
    %v1909 = vunpack.c.l.b16 %v1302
    %v1910 = vunpack.c.h.b16 %v1302
    %v1911 = vunpack.c.l.b16 %v1303
    %v1912 = vunpack.c.h.b16 %v1303
    %v1913 = vunpack.c.l.b16 %v1304
    %v1914 = vunpack.c.h.b16 %v1304
    %v1915 = vunpack.c.l.b16 %v1305
    %v1916 = vunpack.c.h.b16 %v1305
    %v1917 = vunpack.c.l.b16 %v1306
    %v1918 = vunpack.c.h.b16 %v1306
    %v1919 = vunpack.c.l.b16 %v1307
    %v1920 = vunpack.c.h.b16 %v1307
    %v1921 = vunpack.c.l.b16 %v1308
    %v1922 = vunpack.c.h.b16 %v1308
    %v1923 = vunpack.c.l.b16 %v1309
    %v1924 = vunpack.c.h.b16 %v1309
    %v1925 = vunpack.c.l.b16 %v1310
    %v1926 = vunpack.c.h.b16 %v1310
    %v1927 = vunpack.c.l.b16 %v1311
    %v1928 = vunpack.c.h.b16 %v1311
    %v1929 = vunpack.c.l.b16 %v1312
    %v1930 = vunpack.c.h.b16 %v1312
    %v1931 = vunpack.c.l.b16 %v1313
    %v1932 = vunpack.c.h.b16 %v1313
    %v1933 = vunpack.c.l.b16 %v1314
    %v1934 = vunpack.c.h.b16 %v1314
    %v1935 = vunpack.c.l.b16 %v1315
    %v1936 = vunpack.c.h.b16 %v1315
    %v1937 = vunpack.c.l.b16 %v1316
    %v1938 = vunpack.c.h.b16 %v1316
    %v1939 = vunpack.c.l.b16 %v1317
    %v1940 = vunpack.c.h.b16 %v1317
    %v1941 = vunpack.c.l.b16 %v1318
    %v1942 = vunpack.c.h.b16 %v1318
    %v1943 = vunpack.c.l.b16 %v1319
    %v1944 = vunpack.c.h.b16 %v1319
    %v1945 = vunpack.c.l.b16 %v1320
    %v1946 = vunpack.c.h.b16 %v1320
    %v1947 = vunpack.c.l.b16 %v1321
    %v1948 = vunpack.c.h.b16 %v1321
    %v1949 = vunpack.c.l.b16 %v1322
    %v1950 = vunpack.c.h.b16 %v1322
    %v1951 = vunpack.c.l.b16 %v1323
    %v1952 = vunpack.c.h.b16 %v1323
    %v1953 = vunpack.c.l.b16 %v1324
    %v1954 = vunpack.c.h.b16 %v1324
    %v1955 = vunpack.c.l.b16 %v1325
    %v1956 = vunpack.c.h.b16 %v1325
    %v1957 = vunpack.c.l.b16 %v1326
    %v1958 = vunpack.c.h.b16 %v1326
    %v1959 = vunpack.c.l.b16 %v1327
    %v1960 = vunpack.c.h.b16 %v1327
    %v1961 = vunpack.c.l.b16 %v1328
    %v1962 = vunpack.c.h.b16 %v1328
    %v1963 = vunpack.c.l.b16 %v1329
    %v1964 = vunpack.c.h.b16 %v1329
    %v1965 = vunpack.c.l.b16 %v1330
    %v1966 = vunpack.c.h.b16 %v1330
    %v1967 = vunpack.c.l.b16 %v1331
    %v1968 = vunpack.c.h.b16 %v1331
    %v1969 = vunpack.c.l.b16 %v1332
    %v1970 = vunpack.c.h.b16 %v1332
    %v1971 = vunpack.c.l.b16 %v1333
    %v1972 = vunpack.c.h.b16 %v1333
    %v1973 = vunpack.c.l.b16 %v1334
    %v1974 = vunpack.c.h.b16 %v1334
    %v1975 = vpack.c.b16 %v1787, %v1783
    %v1976 = vpack.c.b16 %v1788, %v1784
    %v1977 = vpack.c.b16 %v1789, %v1785
    %v1978 = vpack.c.b16 %v1790, %v1786
    %v1979 = vpack.c.b16 %v1795, %v1791
    %v1980 = vpack.c.b16 %v1796, %v1792
    %v1981 = vpack.c.b16 %v1797, %v1793
    %v1982 = vpack.c.b16 %v1798, %v1794
    %v1983 = vpack.c.b16 %v1803, %v1799
    %v1984 = vpack.c.b16 %v1804, %v1800
    %v1985 = vpack.c.b16 %v1805, %v1801
    %v1986 = vpack.c.b16 %v1806, %v1802
    %v1987 = vpack.c.b16 %v1811, %v1807
    %v1988 = vpack.c.b16 %v1812, %v1808
    %v1989 = vpack.c.b16 %v1813, %v1809
    %v1990 = vpack.c.b16 %v1814, %v1810
    %v1991 = vpack.c.b16 %v1819, %v1815
    %v1992 = vpack.c.b16 %v1820, %v1816
    %v1993 = vpack.c.b16 %v1821, %v1817
    %v1994 = vpack.c.b16 %v1822, %v1818
    %v1995 = vpack.c.b16 %v1827, %v1823
    %v1996 = vpack.c.b16 %v1828, %v1824
    %v1997 = vpack.c.b16 %v1829, %v1825
    %v1998 = vpack.c.b16 %v1830, %v1826
    %v1999 = vpack.c.b16 %v1835, %v1831
    %v2000 = vpack.c.b16 %v1836, %v1832
    %v2001 = vpack.c.b16 %v1837, %v1833
    %v2002 = vpack.c.b16 %v1838, %v1834
    %v2003 = vpack.c.b16 %v1843, %v1839
    %v2004 = vpack.c.b16 %v1844, %v1840
    %v2005 = vpack.c.b16 %v1845, %v1841
    %v2006 = vpack.c.b16 %v1846, %v1842
    %v2007 = vpack.c.b16 %v1851, %v1847
    %v2008 = vpack.c.b16 %v1852, %v1848
    %v2009 = vpack.c.b16 %v1853, %v1849
    %v2010 = vpack.c.b16 %v1854, %v1850
    %v2011 = vpack.c.b16 %v1859, %v1855
    %v2012 = vpack.c.b16 %v1860, %v1856
    %v2013 = vpack.c.b16 %v1861, %v1857
    %v2014 = vpack.c.b16 %v1862, %v1858
    %v2015 = vpack.c.b16 %v1867, %v1863
    %v2016 = vpack.c.b16 %v1868, %v1864
    %v2017 = vpack.c.b16 %v1869, %v1865
    %v2018 = vpack.c.b16 %v1870, %v1866
    %v2019 = vpack.c.b16 %v1875, %v1871
    %v2020 = vpack.c.b16 %v1876, %v1872
    %v2021 = vpack.c.b16 %v1877, %v1873
    %v2022 = vpack.c.b16 %v1878, %v1874
    %v2023 = vpack.c.b16 %v1883, %v1879
    %v2024 = vpack.c.b16 %v1884, %v1880
    %v2025 = vpack.c.b16 %v1885, %v1881
    %v2026 = vpack.c.b16 %v1886, %v1882
    %v2027 = vpack.c.b16 %v1891, %v1887
    %v2028 = vpack.c.b16 %v1892, %v1888
    %v2029 = vpack.c.b16 %v1893, %v1889
    %v2030 = vpack.c.b16 %v1894, %v1890
    %v2031 = vpack.c.b16 %v1899, %v1895
    %v2032 = vpack.c.b16 %v1900, %v1896
    %v2033 = vpack.c.b16 %v1901, %v1897
    %v2034 = vpack.c.b16 %v1902, %v1898
    %v2035 = vpack.c.b16 %v1907, %v1903
    %v2036 = vpack.c.b16 %v1908, %v1904
    %v2037 = vpack.c.b16 %v1909, %v1905
    %v2038 = vpack.c.b16 %v1910, %v1906
    %v2039 = vpack.c.b16 %v1915, %v1911
    %v2040 = vpack.c.b16 %v1916, %v1912
    %v2041 = vpack.c.b16 %v1917, %v1913
    %v2042 = vpack.c.b16 %v1918, %v1914
    %v2043 = vpack.c.b16 %v1923, %v1919
    %v2044 = vpack.c.b16 %v1924, %v1920
    %v2045 = vpack.c.b16 %v1925, %v1921
    %v2046 = vpack.c.b16 %v1926, %v1922
    %v2047 = vpack.c.b16 %v1931, %v1927
    %v2048 = vpack.c.b16 %v1932, %v1928
    %v2049 = vpack.c.b16 %v1933, %v1929
    %v2050 = vpack.c.b16 %v1934, %v1930
    %v2051 = vpack.c.b16 %v1939, %v1935
    %v2052 = vpack.c.b16 %v1940, %v1936
    %v2053 = vpack.c.b16 %v1941, %v1937
    %v2054 = vpack.c.b16 %v1942, %v1938
    %v2055 = vpack.c.b16 %v1947, %v1943
    %v2056 = vpack.c.b16 %v1948, %v1944
    %v2057 = vpack.c.b16 %v1949, %v1945
    %v2058 = vpack.c.b16 %v1950, %v1946
    %v2059 = vpack.c.b16 %v1955, %v1951
    %v2060 = vpack.c.b16 %v1956, %v1952
    %v2061 = vpack.c.b16 %v1957, %v1953
    %v2062 = vpack.c.b16 %v1958, %v1954
    %v2063 = vpack.c.b16 %v1963, %v1959
    %v2064 = vpack.c.b16 %v1964, %v1960
    %v2065 = vpack.c.b16 %v1965, %v1961
    %v2066 = vpack.c.b16 %v1966, %v1962
    %v2067 = vpack.c.b16 %v1971, %v1967
    %v2068 = vpack.c.b16 %v1972, %v1968
    %v2069 = vpack.c.b16 %v1973, %v1969
    %v2070 = vpack.c.b16 %v1974, %v1970
    %2167 = vmatprep.subr.bf16.mxu0 %v1336
    %2168 = vmatpush1.bf16.msra.mxu0 %v1335
    %2169 = vmatprep.subr.bf16.mxu0 %v1338
    %2170 = vmatpush1.bf16.msra.mxu0 %v1337
    %2171 = vmatprep.subr.bf16.mxu0 %v1340
    %2172 = vmatpush1.bf16.msra.mxu0 %v1339
    %2173 = vmatprep.subr.bf16.mxu0 %v1342
    %2174 = vmatpush1.bf16.msra.mxu0 %v1341
    %2175 = vmatprep.subr.bf16.mxu0 %v1344
    %2176 = vmatpush1.bf16.msra.mxu0 %v1343
    %2177 = vmatprep.subr.bf16.mxu0 %v1346
    %2178 = vmatpush1.bf16.msra.mxu0 %v1345
    %2179 = vmatprep.subr.bf16.mxu0 %v1348
    %2180 = vmatpush1.bf16.msra.mxu0 %v1347
    %2181 = vmatprep.subr.bf16.mxu0 %v1350
    %2182 = vmatpush1.bf16.msra.mxu0 %v1349
    %2183 = vmatprep.subr.bf16.mxu0 %v1352
    %2184 = vmatpush1.bf16.msra.mxu0 %v1351
    %2185 = vmatprep.subr.bf16.mxu0 %v1354
    %2186 = vmatpush1.bf16.msra.mxu0 %v1353
    %2187 = vmatprep.subr.bf16.mxu0 %v1356
    %2188 = vmatpush1.bf16.msra.mxu0 %v1355
    %2189 = vmatprep.subr.bf16.mxu0 %v1358
    %2190 = vmatpush1.bf16.msra.mxu0 %v1357
    %2191 = vmatprep.subr.bf16.mxu0 %v1360
    %2192 = vmatpush1.bf16.msra.mxu0 %v1359
    %2193 = vmatprep.subr.bf16.mxu0 %v1362
    %2194 = vmatpush1.bf16.msra.mxu0 %v1361
    %2195 = vmatprep.subr.bf16.mxu0 %v1364
    %2196 = vmatpush1.bf16.msra.mxu0 %v1363
    %2197 = vmatprep.subr.bf16.mxu0 %v1366
    %2198 = vmatpush1.bf16.msra.mxu0 %v1365
    %2199 = vmatprep.mubr.bf16.mxu0 %v1976
    %2200 = vmatmul.mubr.bf16.gmra.mrb[0].mxu0 %v1975
    %v2201 = vpop.f32.mrb[0].mxu0
    %v2202 = vadd.f32 %v1450, %v2201
    %v2203 = vpop.f32.mrb[0].mxu0
    %v2204 = vadd.f32 %v1450, %v2203
    %v2205 = vpop.f32.mrb[0].mxu0
    %v2206 = vadd.f32 %v1455, %v2205
    %v2207 = vpop.f32.mrb[0].mxu0
    %v2208 = vadd.f32 %v1455, %v2207
    %2209 = vmatprep.mubr.bf16.mxu0 %v1980
    %2210 = vmatmul.mubr.bf16.gmra.mrb[0].mxu0 %v1979
    %v2211 = vpop.f32.mrb[0].mxu0
    %v2212 = vadd.f32 %v1460, %v2211
    %v2213 = vpop.f32.mrb[0].mxu0
    %v2214 = vadd.f32 %v1460, %v2213
    %v2215 = vpop.f32.mrb[0].mxu0
    %v2216 = vadd.f32 %v1465, %v2215
    %v2217 = vpop.f32.mrb[0].mxu0
    %v2218 = vadd.f32 %v1465, %v2217
    %2219 = vmatprep.mubr.bf16.mxu0 %v1984
    %2220 = vmatmul.mubr.bf16.gmra.mrb[0].mxu0 %v1983
    %v2221 = vpop.f32.mrb[0].mxu0
    %v2222 = vadd.f32 %v1470, %v2221
    %v2223 = vpop.f32.mrb[0].mxu0
    %v2224 = vadd.f32 %v1470, %v2223
    %v2225 = vpop.f32.mrb[0].mxu0
    %v2226 = vadd.f32 %v1475, %v2225
    %v2227 = vpop.f32.mrb[0].mxu0
    %v2228 = vadd.f32 %v1475, %v2227
    %2229 = vmatprep.mubr.bf16.mxu0 %v1988
    %2230 = vmatmul.mubr.bf16.gmra.mrb[0].mxu0 %v1987
    %v2231 = vpop.f32.mrb[0].mxu0
    %v2232 = vadd.f32 %v1480, %v2231
    %v2233 = vpop.f32.mrb[0].mxu0
    %v2234 = vadd.f32 %v1480, %v2233
    %v2235 = vpop.f32.mrb[0].mxu0
    %v2236 = vadd.f32 %v1485, %v2235
    %v2237 = vpop.f32.mrb[0].mxu0
    %v2238 = vadd.f32 %v1485, %v2237
    %2239 = vmatprep.mubr.bf16.mxu0 %v1992
    %2240 = vmatmul.mubr.bf16.gmra.mrb[0].mxu0 %v1991
    %v2241 = vpop.f32.mrb[0].mxu0
    %v2242 = vadd.f32 %v1490, %v2241
    %v2243 = vpop.f32.mrb[0].mxu0
    %v2244 = vadd.f32 %v1490, %v2243
    %v2245 = vpop.f32.mrb[0].mxu0
    %v2246 = vadd.f32 %v1495, %v2245
    %v2247 = vpop.f32.mrb[0].mxu0
    %v2248 = vadd.f32 %v1495, %v2247
    %2249 = vmatprep.mubr.bf16.mxu0 %v1996
    %2250 = vmatmul.mubr.bf16.gmra.mrb[0].mxu0 %v1995
    %v2251 = vpop.f32.mrb[0].mxu0
    %v2252 = vadd.f32 %v1500, %v2251
    %v2253 = vpop.f32.mrb[0].mxu0
    %v2254 = vadd.f32 %v1500, %v2253
    %v2255 = vpop.f32.mrb[0].mxu0
    %v2256 = vadd.f32 %v1505, %v2255
    %v2257 = vpop.f32.mrb[0].mxu0
    %v2258 = vadd.f32 %v1505, %v2257
    %2259 = vmatprep.mubr.bf16.mxu0 %v2000
    %2260 = vmatmul.mubr.bf16.gmra.mrb[0].mxu0 %v1999
    %v2261 = vpop.f32.mrb[0].mxu0
    %v2262 = vadd.f32 %v1510, %v2261
    %v2263 = vpop.f32.mrb[0].mxu0
    %v2264 = vadd.f32 %v1510, %v2263
    %v2265 = vpop.f32.mrb[0].mxu0
    %v2266 = vadd.f32 %v1515, %v2265
    %v2267 = vpop.f32.mrb[0].mxu0
    %v2268 = vadd.f32 %v1515, %v2267
    %2269 = vmatprep.mubr.bf16.mxu0 %v2004
    %2270 = vmatmul.mubr.bf16.gmra.mrb[0].mxu0 %v2003
    %v2271 = vpop.f32.mrb[0].mxu0
    %v2272 = vadd.f32 %v1520, %v2271
    %v2273 = vpop.f32.mrb[0].mxu0
    %v2274 = vadd.f32 %v1520, %v2273
    %v2275 = vpop.f32.mrb[0].mxu0
    %v2276 = vadd.f32 %v1525, %v2275
    %v2277 = vpop.f32.mrb[0].mxu0
    %v2278 = vadd.f32 %v1525, %v2277
    %2279 = vmatprep.mubr.bf16.mxu0 %v2008
    %2280 = vmatmul.mubr.bf16.gmra.mrb[0].mxu0 %v2007
    %v2281 = vpop.f32.mrb[0].mxu0
    %v2282 = vadd.f32 %v1530, %v2281
    %v2283 = vpop.f32.mrb[0].mxu0
    %v2284 = vadd.f32 %v1530, %v2283
    %v2285 = vpop.f32.mrb[0].mxu0
    %v2286 = vadd.f32 %v1535, %v2285
    %v2287 = vpop.f32.mrb[0].mxu0
    %v2288 = vadd.f32 %v1535, %v2287
    %2289 = vmatprep.mubr.bf16.mxu0 %v2012
    %2290 = vmatmul.mubr.bf16.gmra.mrb[0].mxu0 %v2011
    %v2291 = vpop.f32.mrb[0].mxu0
    %v2292 = vadd.f32 %v1540, %v2291
    %v2293 = vpop.f32.mrb[0].mxu0
    %v2294 = vadd.f32 %v1540, %v2293
    %v2295 = vpop.f32.mrb[0].mxu0
    %v2296 = vadd.f32 %v1545, %v2295
    %v2297 = vpop.f32.mrb[0].mxu0
    %v2298 = vadd.f32 %v1545, %v2297
    %2299 = vmatprep.mubr.bf16.mxu0 %v2016
    %2300 = vmatmul.mubr.bf16.gmra.mrb[0].mxu0 %v2015
    %v2301 = vpop.f32.mrb[0].mxu0
    %v2302 = vadd.f32 %v1550, %v2301
    %v2303 = vpop.f32.mrb[0].mxu0
    %v2304 = vadd.f32 %v1550, %v2303
    %v2305 = vpop.f32.mrb[0].mxu0
    %v2306 = vadd.f32 %v1555, %v2305
    %v2307 = vpop.f32.mrb[0].mxu0
    %v2308 = vadd.f32 %v1555, %v2307
    %2309 = vmatprep.mubr.bf16.mxu0 %v2020
    %2310 = vmatmul.mubr.bf16.gmra.mrb[0].mxu0 %v2019
    %v2311 = vpop.f32.mrb[0].mxu0
    %v2312 = vadd.f32 %v1560, %v2311
    %v2313 = vpop.f32.mrb[0].mxu0
    %v2314 = vadd.f32 %v1560, %v2313
    %v2315 = vpop.f32.mrb[0].mxu0
    %v2316 = vadd.f32 %v1565, %v2315
    %v2317 = vpop.f32.mrb[0].mxu0
    %v2318 = vadd.f32 %v1565, %v2317
    %2319 = vmatprep.mubr.bf16.mxu0 %v2024
    %2320 = vmatmul.mubr.bf16.gmra.mrb[0].mxu0 %v2023
    %v2321 = vpop.f32.mrb[0].mxu0
    %v2322 = vadd.f32 %v1570, %v2321
    %v2323 = vpop.f32.mrb[0].mxu0
    %v2324 = vadd.f32 %v1570, %v2323
    %v2325 = vpop.f32.mrb[0].mxu0
    %v2326 = vadd.f32 %v1575, %v2325
    %v2327 = vpop.f32.mrb[0].mxu0
    %v2328 = vadd.f32 %v1575, %v2327
    %2329 = vmatprep.mubr.bf16.mxu0 %v2028
    %2330 = vmatmul.mubr.bf16.gmra.mrb[0].mxu0 %v2027
    %v2331 = vpop.f32.mrb[0].mxu0
    %v2332 = vadd.f32 %v1580, %v2331
    %v2333 = vpop.f32.mrb[0].mxu0
    %v2334 = vadd.f32 %v1580, %v2333
    %v2335 = vpop.f32.mrb[0].mxu0
    %v2336 = vadd.f32 %v1585, %v2335
    %v2337 = vpop.f32.mrb[0].mxu0
    %v2338 = vadd.f32 %v1585, %v2337
    %2339 = vmatprep.mubr.bf16.mxu0 %v2032
    %2340 = vmatmul.mubr.bf16.gmra.mrb[0].mxu0 %v2031
    %v2341 = vpop.f32.mrb[0].mxu0
    %v2342 = vadd.f32 %v1590, %v2341
    %v2343 = vpop.f32.mrb[0].mxu0
    %v2344 = vadd.f32 %v1590, %v2343
    %v2345 = vpop.f32.mrb[0].mxu0
    %v2346 = vadd.f32 %v1595, %v2345
    %v2347 = vpop.f32.mrb[0].mxu0
    %v2348 = vadd.f32 %v1595, %v2347
    %2349 = vmatprep.mubr.bf16.mxu0 %v2036
    %2350 = vmatmul.mubr.bf16.gmra.mrb[0].mxu0 %v2035
    %v2351 = vpop.f32.mrb[0].mxu0
    %v2352 = vadd.f32 %v1600, %v2351
    %v2353 = vpop.f32.mrb[0].mxu0
    %v2354 = vadd.f32 %v1600, %v2353
    %v2355 = vpop.f32.mrb[0].mxu0
    %v2356 = vadd.f32 %v1605, %v2355
    %v2357 = vpop.f32.mrb[0].mxu0
    %v2358 = vadd.f32 %v1605, %v2357
    %2359 = vmatprep.mubr.bf16.mxu0 %v2040
    %2360 = vmatmul.mubr.bf16.gmra.mrb[0].mxu0 %v2039
    %v2361 = vpop.f32.mrb[0].mxu0
    %v2362 = vadd.f32 %v1610, %v2361
    %v2363 = vpop.f32.mrb[0].mxu0
    %v2364 = vadd.f32 %v1610, %v2363
    %v2365 = vpop.f32.mrb[0].mxu0
    %v2366 = vadd.f32 %v1615, %v2365
    %v2367 = vpop.f32.mrb[0].mxu0
    %v2368 = vadd.f32 %v1615, %v2367
    %2369 = vmatprep.mubr.bf16.mxu0 %v2044
    %2370 = vmatmul.mubr.bf16.gmra.mrb[0].mxu0 %v2043
    %v2371 = vpop.f32.mrb[0].mxu0
    %v2372 = vadd.f32 %v1620, %v2371
    %v2373 = vpop.f32.mrb[0].mxu0
    %v2374 = vadd.f32 %v1620, %v2373
    %v2375 = vpop.f32.mrb[0].mxu0
    %v2376 = vadd.f32 %v1625, %v2375
    %v2377 = vpop.f32.mrb[0].mxu0
    %v2378 = vadd.f32 %v1625, %v2377
    %2379 = vmatprep.mubr.bf16.mxu0 %v2048
    %2380 = vmatmul.mubr.bf16.gmra.mrb[0].mxu0 %v2047
    %v2381 = vpop.f32.mrb[0].mxu0
    %v2382 = vadd.f32 %v1630, %v2381
    %v2383 = vpop.f32.mrb[0].mxu0
    %v2384 = vadd.f32 %v1630, %v2383
    %v2385 = vpop.f32.mrb[0].mxu0
    %v2386 = vadd.f32 %v1635, %v2385
    %v2387 = vpop.f32.mrb[0].mxu0
    %v2388 = vadd.f32 %v1635, %v2387
    %2389 = vmatprep.mubr.bf16.mxu0 %v2052
    %2390 = vmatmul.mubr.bf16.gmra.mrb[0].mxu0 %v2051
    %v2391 = vpop.f32.mrb[0].mxu0
    %v2392 = vadd.f32 %v1640, %v2391
    %v2393 = vpop.f32.mrb[0].mxu0
    %v2394 = vadd.f32 %v1640, %v2393
    %v2395 = vpop.f32.mrb[0].mxu0
    %v2396 = vadd.f32 %v1645, %v2395
    %v2397 = vpop.f32.mrb[0].mxu0
    %v2398 = vadd.f32 %v1645, %v2397
    %2399 = vmatprep.mubr.bf16.mxu0 %v2056
    %2400 = vmatmul.mubr.bf16.gmra.mrb[0].mxu0 %v2055
    %v2401 = vpop.f32.mrb[0].mxu0
    %v2402 = vadd.f32 %v1650, %v2401
    %v2403 = vpop.f32.mrb[0].mxu0
    %v2404 = vadd.f32 %v1650, %v2403
    %v2405 = vpop.f32.mrb[0].mxu0
    %v2406 = vadd.f32 %v1655, %v2405
    %v2407 = vpop.f32.mrb[0].mxu0
    %v2408 = vadd.f32 %v1655, %v2407
    %2409 = vmatprep.mubr.bf16.mxu0 %v2060
    %2410 = vmatmul.mubr.bf16.gmra.mrb[0].mxu0 %v2059
    %v2411 = vpop.f32.mrb[0].mxu0
    %v2412 = vadd.f32 %v1660, %v2411
    %v2413 = vpop.f32.mrb[0].mxu0
    %v2414 = vadd.f32 %v1660, %v2413
    %v2415 = vpop.f32.mrb[0].mxu0
    %v2416 = vadd.f32 %v1665, %v2415
    %v2417 = vpop.f32.mrb[0].mxu0
    %v2418 = vadd.f32 %v1665, %v2417
    %2419 = vmatprep.mubr.bf16.mxu0 %v2064
    %2420 = vmatmul.mubr.bf16.gmra.mrb[0].mxu0 %v2063
    %v2421 = vpop.f32.mrb[0].mxu0
    %v2422 = vadd.f32 %v1670, %v2421
    %v2423 = vpop.f32.mrb[0].mxu0
    %v2424 = vadd.f32 %v1670, %v2423
    %v2425 = vpop.f32.mrb[0].mxu0
    %v2426 = vadd.f32 %v1675, %v2425
    %v2427 = vpop.f32.mrb[0].mxu0
    %v2428 = vadd.f32 %v1675, %v2427
    %2429 = vmatprep.mubr.bf16.mxu0 %v2068
    %2430 = vmatmul.mubr.bf16.gmra.mrb[0].mxu0 %v2067
    %v2431 = vpop.f32.mrb[0].mxu0
    %v2432 = vadd.f32 %v1680, %v2431
    %v2433 = vpop.f32.mrb[0].mxu0
    %v2434 = vadd.f32 %v1680, %v2433
    %v2435 = vpop.f32.mrb[0].mxu0
    %v2436 = vadd.f32 %v1685, %v2435
    %v2437 = vpop.f32.mrb[0].mxu0
    %v2438 = vadd.f32 %v1685, %v2437
    %2439 = vdwg.mxu0
    %2440 = vmatprep.subr.bf16.mxu0 %v1368
    %2441 = vmatpush1.bf16.msra.mxu0 %v1367
    %2442 = vmatprep.subr.bf16.mxu0 %v1370
    %2443 = vmatpush1.bf16.msra.mxu0 %v1369
    %2444 = vmatprep.subr.bf16.mxu0 %v1372
    %2445 = vmatpush1.bf16.msra.mxu0 %v1371
    %2446 = vmatprep.subr.bf16.mxu0 %v1374
    %2447 = vmatpush1.bf16.msra.mxu0 %v1373
    %2448 = vmatprep.subr.bf16.mxu0 %v1376
    %2449 = vmatpush1.bf16.msra.mxu0 %v1375
    %2450 = vmatprep.subr.bf16.mxu0 %v1378
    %2451 = vmatpush1.bf16.msra.mxu0 %v1377
    %2452 = vmatprep.subr.bf16.mxu0 %v1380
    %2453 = vmatpush1.bf16.msra.mxu0 %v1379
    %2454 = vmatprep.subr.bf16.mxu0 %v1382
    %2455 = vmatpush1.bf16.msra.mxu0 %v1381
    %2456 = vmatprep.subr.bf16.mxu0 %v1384
    %2457 = vmatpush1.bf16.msra.mxu0 %v1383
    %2458 = vmatprep.subr.bf16.mxu0 %v1386
    %2459 = vmatpush1.bf16.msra.mxu0 %v1385
    %2460 = vmatprep.subr.bf16.mxu0 %v1388
    %2461 = vmatpush1.bf16.msra.mxu0 %v1387
    %2462 = vmatprep.subr.bf16.mxu0 %v1390
    %2463 = vmatpush1.bf16.msra.mxu0 %v1389
    %2464 = vmatprep.subr.bf16.mxu0 %v1392
    %2465 = vmatpush1.bf16.msra.mxu0 %v1391
    %2466 = vmatprep.subr.bf16.mxu0 %v1394
    %2467 = vmatpush1.bf16.msra.mxu0 %v1393
    %2468 = vmatprep.subr.bf16.mxu0 %v1396
    %2469 = vmatpush1.bf16.msra.mxu0 %v1395
    %2470 = vmatprep.subr.bf16.mxu0 %v1398
    %2471 = vmatpush1.bf16.msra.mxu0 %v1397
    %2472 = vmatprep.mubr.bf16.mxu0 %v1978
    %2473 = vmatmul.mubr.bf16.gmra.mrb[0].mxu0 %v1977
    %v2474 = vpop.f32.mrb[0].mxu0
    %v2475 = vadd.f32 %v2202, %v2474
    %v2476 = vpop.f32.mrb[0].mxu0
    %v2477 = vadd.f32 %v2204, %v2476
    %v2478 = vpop.f32.mrb[0].mxu0
    %v2479 = vadd.f32 %v2206, %v2478
    %v2480 = vpop.f32.mrb[0].mxu0
    %v2481 = vadd.f32 %v2208, %v2480
    %2482 = vmatprep.mubr.bf16.mxu0 %v1982
    %2483 = vmatmul.mubr.bf16.gmra.mrb[0].mxu0 %v1981
    %v2484 = vpop.f32.mrb[0].mxu0
    %v2485 = vadd.f32 %v2212, %v2484
    %v2486 = vpop.f32.mrb[0].mxu0
    %v2487 = vadd.f32 %v2214, %v2486
    %v2488 = vpop.f32.mrb[0].mxu0
    %v2489 = vadd.f32 %v2216, %v2488
    %v2490 = vpop.f32.mrb[0].mxu0
    %v2491 = vadd.f32 %v2218, %v2490
    %2492 = vmatprep.mubr.bf16.mxu0 %v1986
    %2493 = vmatmul.mubr.bf16.gmra.mrb[0].mxu0 %v1985
    %v2494 = vpop.f32.mrb[0].mxu0
    %v2495 = vadd.f32 %v2222, %v2494
    %v2496 = vpop.f32.mrb[0].mxu0
    %v2497 = vadd.f32 %v2224, %v2496
    %v2498 = vpop.f32.mrb[0].mxu0
    %v2499 = vadd.f32 %v2226, %v2498
    %v2500 = vpop.f32.mrb[0].mxu0
    %v2501 = vadd.f32 %v2228, %v2500
    %2502 = vmatprep.mubr.bf16.mxu0 %v1990
    %2503 = vmatmul.mubr.bf16.gmra.mrb[0].mxu0 %v1989
    %v2504 = vpop.f32.mrb[0].mxu0
    %v2505 = vadd.f32 %v2232, %v2504
    %v2506 = vpop.f32.mrb[0].mxu0
    %v2507 = vadd.f32 %v2234, %v2506
    %v2508 = vpop.f32.mrb[0].mxu0
    %v2509 = vadd.f32 %v2236, %v2508
    %v2510 = vpop.f32.mrb[0].mxu0
    %v2511 = vadd.f32 %v2238, %v2510
    %2512 = vmatprep.mubr.bf16.mxu0 %v1994
    %2513 = vmatmul.mubr.bf16.gmra.mrb[0].mxu0 %v1993
    %v2514 = vpop.f32.mrb[0].mxu0
    %v2515 = vadd.f32 %v2242, %v2514
    %v2516 = vpop.f32.mrb[0].mxu0
    %v2517 = vadd.f32 %v2244, %v2516
    %v2518 = vpop.f32.mrb[0].mxu0
    %v2519 = vadd.f32 %v2246, %v2518
    %v2520 = vpop.f32.mrb[0].mxu0
    %v2521 = vadd.f32 %v2248, %v2520
    %2522 = vmatprep.mubr.bf16.mxu0 %v1998
    %2523 = vmatmul.mubr.bf16.gmra.mrb[0].mxu0 %v1997
    %v2524 = vpop.f32.mrb[0].mxu0
    %v2525 = vadd.f32 %v2252, %v2524
    %v2526 = vpop.f32.mrb[0].mxu0
    %v2527 = vadd.f32 %v2254, %v2526
    %v2528 = vpop.f32.mrb[0].mxu0
    %v2529 = vadd.f32 %v2256, %v2528
    %v2530 = vpop.f32.mrb[0].mxu0
    %v2531 = vadd.f32 %v2258, %v2530
    %2532 = vmatprep.mubr.bf16.mxu0 %v2002
    %2533 = vmatmul.mubr.bf16.gmra.mrb[0].mxu0 %v2001
    %v2534 = vpop.f32.mrb[0].mxu0
    %v2535 = vadd.f32 %v2262, %v2534
    %v2536 = vpop.f32.mrb[0].mxu0
    %v2537 = vadd.f32 %v2264, %v2536
    %v2538 = vpop.f32.mrb[0].mxu0
    %v2539 = vadd.f32 %v2266, %v2538
    %v2540 = vpop.f32.mrb[0].mxu0
    %v2541 = vadd.f32 %v2268, %v2540
    %2542 = vmatprep.mubr.bf16.mxu0 %v2006
    %2543 = vmatmul.mubr.bf16.gmra.mrb[0].mxu0 %v2005
    %v2544 = vpop.f32.mrb[0].mxu0
    %v2545 = vadd.f32 %v2272, %v2544
    %v2546 = vpop.f32.mrb[0].mxu0
    %v2547 = vadd.f32 %v2274, %v2546
    %v2548 = vpop.f32.mrb[0].mxu0
    %v2549 = vadd.f32 %v2276, %v2548
    %v2550 = vpop.f32.mrb[0].mxu0
    %v2551 = vadd.f32 %v2278, %v2550
    %2552 = vmatprep.mubr.bf16.mxu0 %v2010
    %2553 = vmatmul.mubr.bf16.gmra.mrb[0].mxu0 %v2009
    %v2554 = vpop.f32.mrb[0].mxu0
    %v2555 = vadd.f32 %v2282, %v2554
    %v2556 = vpop.f32.mrb[0].mxu0
    %v2557 = vadd.f32 %v2284, %v2556
    %v2558 = vpop.f32.mrb[0].mxu0
    %v2559 = vadd.f32 %v2286, %v2558
    %v2560 = vpop.f32.mrb[0].mxu0
    %v2561 = vadd.f32 %v2288, %v2560
    %2562 = vmatprep.mubr.bf16.mxu0 %v2014
    %2563 = vmatmul.mubr.bf16.gmra.mrb[0].mxu0 %v2013
    %v2564 = vpop.f32.mrb[0].mxu0
    %v2565 = vadd.f32 %v2292, %v2564
    %v2566 = vpop.f32.mrb[0].mxu0
    %v2567 = vadd.f32 %v2294, %v2566
    %v2568 = vpop.f32.mrb[0].mxu0
    %v2569 = vadd.f32 %v2296, %v2568
    %v2570 = vpop.f32.mrb[0].mxu0
    %v2571 = vadd.f32 %v2298, %v2570
    %2572 = vmatprep.mubr.bf16.mxu0 %v2018
    %2573 = vmatmul.mubr.bf16.gmra.mrb[0].mxu0 %v2017
    %v2574 = vpop.f32.mrb[0].mxu0
    %v2575 = vadd.f32 %v2302, %v2574
    %v2576 = vpop.f32.mrb[0].mxu0
    %v2577 = vadd.f32 %v2304, %v2576
    %v2578 = vpop.f32.mrb[0].mxu0
    %v2579 = vadd.f32 %v2306, %v2578
    %v2580 = vpop.f32.mrb[0].mxu0
    %v2581 = vadd.f32 %v2308, %v2580
    %2582 = vmatprep.mubr.bf16.mxu0 %v2022
    %2583 = vmatmul.mubr.bf16.gmra.mrb[0].mxu0 %v2021
    %v2584 = vpop.f32.mrb[0].mxu0
    %v2585 = vadd.f32 %v2312, %v2584
    %v2586 = vpop.f32.mrb[0].mxu0
    %v2587 = vadd.f32 %v2314, %v2586
    %v2588 = vpop.f32.mrb[0].mxu0
    %v2589 = vadd.f32 %v2316, %v2588
    %v2590 = vpop.f32.mrb[0].mxu0
    %v2591 = vadd.f32 %v2318, %v2590
    %2592 = vmatprep.mubr.bf16.mxu0 %v2026
    %2593 = vmatmul.mubr.bf16.gmra.mrb[0].mxu0 %v2025
    %v2594 = vpop.f32.mrb[0].mxu0
    %v2595 = vadd.f32 %v2322, %v2594
    %v2596 = vpop.f32.mrb[0].mxu0
    %v2597 = vadd.f32 %v2324, %v2596
    %v2598 = vpop.f32.mrb[0].mxu0
    %v2599 = vadd.f32 %v2326, %v2598
    %v2600 = vpop.f32.mrb[0].mxu0
    %v2601 = vadd.f32 %v2328, %v2600
    %2602 = vmatprep.mubr.bf16.mxu0 %v2030
    %2603 = vmatmul.mubr.bf16.gmra.mrb[0].mxu0 %v2029
    %v2604 = vpop.f32.mrb[0].mxu0
    %v2605 = vadd.f32 %v2332, %v2604
    %v2606 = vpop.f32.mrb[0].mxu0
    %v2607 = vadd.f32 %v2334, %v2606
    %v2608 = vpop.f32.mrb[0].mxu0
    %v2609 = vadd.f32 %v2336, %v2608
    %v2610 = vpop.f32.mrb[0].mxu0
    %v2611 = vadd.f32 %v2338, %v2610
    %2612 = vmatprep.mubr.bf16.mxu0 %v2034
    %2613 = vmatmul.mubr.bf16.gmra.mrb[0].mxu0 %v2033
    %v2614 = vpop.f32.mrb[0].mxu0
    %v2615 = vadd.f32 %v2342, %v2614
    %v2616 = vpop.f32.mrb[0].mxu0
    %v2617 = vadd.f32 %v2344, %v2616
    %v2618 = vpop.f32.mrb[0].mxu0
    %v2619 = vadd.f32 %v2346, %v2618
    %v2620 = vpop.f32.mrb[0].mxu0
    %v2621 = vadd.f32 %v2348, %v2620
    %2622 = vmatprep.mubr.bf16.mxu0 %v2038
    %2623 = vmatmul.mubr.bf16.gmra.mrb[0].mxu0 %v2037
    %v2624 = vpop.f32.mrb[0].mxu0
    %v2625 = vadd.f32 %v2352, %v2624
    %v2626 = vpop.f32.mrb[0].mxu0
    %v2627 = vadd.f32 %v2354, %v2626
    %v2628 = vpop.f32.mrb[0].mxu0
    %v2629 = vadd.f32 %v2356, %v2628
    %v2630 = vpop.f32.mrb[0].mxu0
    %v2631 = vadd.f32 %v2358, %v2630
    %2632 = vmatprep.mubr.bf16.mxu0 %v2042
    %2633 = vmatmul.mubr.bf16.gmra.mrb[0].mxu0 %v2041
    %v2634 = vpop.f32.mrb[0].mxu0
    %v2635 = vadd.f32 %v2362, %v2634
    %v2636 = vpop.f32.mrb[0].mxu0
    %v2637 = vadd.f32 %v2364, %v2636
    %v2638 = vpop.f32.mrb[0].mxu0
    %v2639 = vadd.f32 %v2366, %v2638
    %v2640 = vpop.f32.mrb[0].mxu0
    %v2641 = vadd.f32 %v2368, %v2640
    %2642 = vmatprep.mubr.bf16.mxu0 %v2046
    %2643 = vmatmul.mubr.bf16.gmra.mrb[0].mxu0 %v2045
    %v2644 = vpop.f32.mrb[0].mxu0
    %v2645 = vadd.f32 %v2372, %v2644
    %v2646 = vpop.f32.mrb[0].mxu0
    %v2647 = vadd.f32 %v2374, %v2646
    %v2648 = vpop.f32.mrb[0].mxu0
    %v2649 = vadd.f32 %v2376, %v2648
    %v2650 = vpop.f32.mrb[0].mxu0
    %v2651 = vadd.f32 %v2378, %v2650
    %2652 = vmatprep.mubr.bf16.mxu0 %v2050
    %2653 = vmatmul.mubr.bf16.gmra.mrb[0].mxu0 %v2049
    %v2654 = vpop.f32.mrb[0].mxu0
    %v2655 = vadd.f32 %v2382, %v2654
    %v2656 = vpop.f32.mrb[0].mxu0
    %v2657 = vadd.f32 %v2384, %v2656
    %v2658 = vpop.f32.mrb[0].mxu0
    %v2659 = vadd.f32 %v2386, %v2658
    %v2660 = vpop.f32.mrb[0].mxu0
    %v2661 = vadd.f32 %v2388, %v2660
    %2662 = vmatprep.mubr.bf16.mxu0 %v2054
    %2663 = vmatmul.mubr.bf16.gmra.mrb[0].mxu0 %v2053
    %v2664 = vpop.f32.mrb[0].mxu0
    %v2665 = vadd.f32 %v2392, %v2664
    %v2666 = vpop.f32.mrb[0].mxu0
    %v2667 = vadd.f32 %v2394, %v2666
    %v2668 = vpop.f32.mrb[0].mxu0
    %v2669 = vadd.f32 %v2396, %v2668
    %v2670 = vpop.f32.mrb[0].mxu0
    %v2671 = vadd.f32 %v2398, %v2670
    %2672 = vmatprep.mubr.bf16.mxu0 %v2058
    %2673 = vmatmul.mubr.bf16.gmra.mrb[0].mxu0 %v2057
    %v2674 = vpop.f32.mrb[0].mxu0
    %v2675 = vadd.f32 %v2402, %v2674
    %v2676 = vpop.f32.mrb[0].mxu0
    %v2677 = vadd.f32 %v2404, %v2676
    %v2678 = vpop.f32.mrb[0].mxu0
    %v2679 = vadd.f32 %v2406, %v2678
    %v2680 = vpop.f32.mrb[0].mxu0
    %v2681 = vadd.f32 %v2408, %v2680
    %2682 = vmatprep.mubr.bf16.mxu0 %v2062
    %2683 = vmatmul.mubr.bf16.gmra.mrb[0].mxu0 %v2061
    %v2684 = vpop.f32.mrb[0].mxu0
    %v2685 = vadd.f32 %v2412, %v2684
    %v2686 = vpop.f32.mrb[0].mxu0
    %v2687 = vadd.f32 %v2414, %v2686
    %v2688 = vpop.f32.mrb[0].mxu0
    %v2689 = vadd.f32 %v2416, %v2688
    %v2690 = vpop.f32.mrb[0].mxu0
    %v2691 = vadd.f32 %v2418, %v2690
    %2692 = vmatprep.mubr.bf16.mxu0 %v2066
    %2693 = vmatmul.mubr.bf16.gmra.mrb[0].mxu0 %v2065
    %v2694 = vpop.f32.mrb[0].mxu0
    %v2695 = vadd.f32 %v2422, %v2694
    %v2696 = vpop.f32.mrb[0].mxu0
    %v2697 = vadd.f32 %v2424, %v2696
    %v2698 = vpop.f32.mrb[0].mxu0
    %v2699 = vadd.f32 %v2426, %v2698
    %v2700 = vpop.f32.mrb[0].mxu0
    %v2701 = vadd.f32 %v2428, %v2700
    %2702 = vmatprep.mubr.bf16.mxu0 %v2070
    %2703 = vmatmul.mubr.bf16.gmra.mrb[0].mxu0 %v2069
    %v2704 = vpop.f32.mrb[0].mxu0
    %v2705 = vadd.f32 %v2432, %v2704
    %v2706 = vpop.f32.mrb[0].mxu0
    %v2707 = vadd.f32 %v2434, %v2706
    %v2708 = vpop.f32.mrb[0].mxu0
    %v2709 = vadd.f32 %v2436, %v2708
    %v2710 = vpop.f32.mrb[0].mxu0
    %v2711 = vadd.f32 %v2438, %v2710
    %2712 = vdwg.mxu0
    %v2713 = vmax.f32 %v2475, 0.0
    %v2714 = vmax.f32 %v2477, 0.0
    %v2715 = vmax.f32 %v2479, 0.0
    %v2716 = vmax.f32 %v2481, 0.0
    %v2717 = vmax.f32 %v2485, 0.0
    %v2718 = vmax.f32 %v2487, 0.0
    %v2719 = vmax.f32 %v2489, 0.0
    %v2720 = vmax.f32 %v2491, 0.0
    %v2721 = vmax.f32 %v2495, 0.0
    %v2722 = vmax.f32 %v2497, 0.0
    %v2723 = vmax.f32 %v2499, 0.0
    %v2724 = vmax.f32 %v2501, 0.0
    %v2725 = vmax.f32 %v2505, 0.0
    %v2726 = vmax.f32 %v2507, 0.0
    %v2727 = vmax.f32 %v2509, 0.0
    %v2728 = vmax.f32 %v2511, 0.0
    %v2729 = vmax.f32 %v2515, 0.0
    %v2730 = vmax.f32 %v2517, 0.0
    %v2731 = vmax.f32 %v2519, 0.0
    %v2732 = vmax.f32 %v2521, 0.0
    %v2733 = vmax.f32 %v2525, 0.0
    %v2734 = vmax.f32 %v2527, 0.0
    %v2735 = vmax.f32 %v2529, 0.0
    %v2736 = vmax.f32 %v2531, 0.0
    %v2737 = vmax.f32 %v2535, 0.0
    %v2738 = vmax.f32 %v2537, 0.0
    %v2739 = vmax.f32 %v2539, 0.0
    %v2740 = vmax.f32 %v2541, 0.0
    %v2741 = vmax.f32 %v2545, 0.0
    %v2742 = vmax.f32 %v2547, 0.0
    %v2743 = vmax.f32 %v2549, 0.0
    %v2744 = vmax.f32 %v2551, 0.0
    %v2745 = vmax.f32 %v2555, 0.0
    %v2746 = vmax.f32 %v2557, 0.0
    %v2747 = vmax.f32 %v2559, 0.0
    %v2748 = vmax.f32 %v2561, 0.0
    %v2749 = vmax.f32 %v2565, 0.0
    %v2750 = vmax.f32 %v2567, 0.0
    %v2751 = vmax.f32 %v2569, 0.0
    %v2752 = vmax.f32 %v2571, 0.0
    %v2753 = vmax.f32 %v2575, 0.0
    %v2754 = vmax.f32 %v2577, 0.0
    %v2755 = vmax.f32 %v2579, 0.0
    %v2756 = vmax.f32 %v2581, 0.0
    %v2757 = vmax.f32 %v2585, 0.0
    %v2758 = vmax.f32 %v2587, 0.0
    %v2759 = vmax.f32 %v2589, 0.0
    %v2760 = vmax.f32 %v2591, 0.0
    %v2761 = vmax.f32 %v2595, 0.0
    %v2762 = vmax.f32 %v2597, 0.0
    %v2763 = vmax.f32 %v2599, 0.0
    %v2764 = vmax.f32 %v2601, 0.0
    %v2765 = vmax.f32 %v2605, 0.0
    %v2766 = vmax.f32 %v2607, 0.0
    %v2767 = vmax.f32 %v2609, 0.0
    %v2768 = vmax.f32 %v2611, 0.0
    %v2769 = vmax.f32 %v2615, 0.0
    %v2770 = vmax.f32 %v2617, 0.0
    %v2771 = vmax.f32 %v2619, 0.0
    %v2772 = vmax.f32 %v2621, 0.0
    %v2773 = vmax.f32 %v2625, 0.0
    %v2774 = vmax.f32 %v2627, 0.0
    %v2775 = vmax.f32 %v2629, 0.0
    %v2776 = vmax.f32 %v2631, 0.0
    %v2777 = vmax.f32 %v2635, 0.0
    %v2778 = vmax.f32 %v2637, 0.0
    %v2779 = vmax.f32 %v2639, 0.0
    %v2780 = vmax.f32 %v2641, 0.0
    %v2781 = vmax.f32 %v2645, 0.0
    %v2782 = vmax.f32 %v2647, 0.0
    %v2783 = vmax.f32 %v2649, 0.0
    %v2784 = vmax.f32 %v2651, 0.0
    %v2785 = vmax.f32 %v2655, 0.0
    %v2786 = vmax.f32 %v2657, 0.0
    %v2787 = vmax.f32 %v2659, 0.0
    %v2788 = vmax.f32 %v2661, 0.0
    %v2789 = vmax.f32 %v2665, 0.0
    %v2790 = vmax.f32 %v2667, 0.0
    %v2791 = vmax.f32 %v2669, 0.0
    %v2792 = vmax.f32 %v2671, 0.0
    %v2793 = vmax.f32 %v2675, 0.0
    %v2794 = vmax.f32 %v2677, 0.0
    %v2795 = vmax.f32 %v2679, 0.0
    %v2796 = vmax.f32 %v2681, 0.0
    %v2797 = vmax.f32 %v2685, 0.0
    %v2798 = vmax.f32 %v2687, 0.0
    %v2799 = vmax.f32 %v2689, 0.0
    %v2800 = vmax.f32 %v2691, 0.0
    %v2801 = vmax.f32 %v2695, 0.0
    %v2802 = vmax.f32 %v2697, 0.0
    %v2803 = vmax.f32 %v2699, 0.0
    %v2804 = vmax.f32 %v2701, 0.0
    %v2805 = vmax.f32 %v2705, 0.0
    %v2806 = vmax.f32 %v2707, 0.0
    %v2807 = vmax.f32 %v2709, 0.0
    %v2808 = vmax.f32 %v2711, 0.0
    %v2809 = vld [vmem:[%s5] sm:$0xff]
    %v2810 = vld [vmem:[%s5 + $0x8] sm:$0xff]
    %v2811 = vld [vmem:[%s5 + $0x10] sm:$0xff]
    %v2812 = vld [vmem:[%s5 + $0x18] sm:$0xff]
    %v2813 = vld [vmem:[%s5 + $0x20] sm:$0xff]
    %v2814 = vld [vmem:[%s5 + $0x28] sm:$0xff]
    %v2815 = vld [vmem:[%s5 + $0x30] sm:$0xff]
    %v2816 = vld [vmem:[%s5 + $0x38] sm:$0xff]
    %v2817 = vld [vmem:[%s5 + $0x40] sm:$0xff]
    %v2818 = vld [vmem:[%s5 + $0x48] sm:$0xff]
    %v2819 = vld [vmem:[%s5 + $0x50] sm:$0xff]
    %v2820 = vld [vmem:[%s5 + $0x58] sm:$0xff]
    %v2821 = vld [vmem:[%s5 + $0x60] sm:$0xff]
    %v2822 = vld [vmem:[%s5 + $0x68] sm:$0xff]
    %v2823 = vld [vmem:[%s5 + $0x70] sm:$0xff]
    %v2824 = vld [vmem:[%s5 + $0x78] sm:$0xff]
    %v2825 = vld [vmem:[%s5 + $0x80] sm:$0xff]
    %v2826 = vld [vmem:[%s5 + $0x88] sm:$0xff]
    %v2827 = vld [vmem:[%s5 + $0x90] sm:$0xff]
    %v2828 = vld [vmem:[%s5 + $0x98] sm:$0xff]
    %v2829 = vld [vmem:[%s5 + $0xa0] sm:$0xff]
    %v2830 = vld [vmem:[%s5 + $0xa8] sm:$0xff]
    %v2831 = vld [vmem:[%s5 + $0xb0] sm:$0xff]
    %v2832 = vld [vmem:[%s5 + $0xb8] sm:$0xff]
    %v2833 = vld [vmem:[%s5 + $0xc0] sm:$0xff]
    %v2834 = vld [vmem:[%s5 + $0xc8] sm:$0xff]
    %v2835 = vld [vmem:[%s5 + $0xd0] sm:$0xff]
    %v2836 = vld [vmem:[%s5 + $0xd8] sm:$0xff]
    %v2837 = vld [vmem:[%s5 + $0xe0] sm:$0xff]
    %v2838 = vld [vmem:[%s5 + $0xe8] sm:$0xff]
    %v2839 = vld [vmem:[%s5 + $0xf0] sm:$0xff]
    %v2840 = vld [vmem:[%s5 + $0xf8] sm:$0xff]
    %v2841 = vld [vmem:[%s5 + $0x100] sm:$0xff]
    %v2842 = vld [vmem:[%s5 + $0x108] sm:$0xff]
    %v2843 = vld [vmem:[%s5 + $0x110] sm:$0xff]
    %v2844 = vld [vmem:[%s5 + $0x118] sm:$0xff]
    %v2845 = vld [vmem:[%s5 + $0x120] sm:$0xff]
    %v2846 = vld [vmem:[%s5 + $0x128] sm:$0xff]
    %v2847 = vld [vmem:[%s5 + $0x130] sm:$0xff]
    %v2848 = vld [vmem:[%s5 + $0x138] sm:$0xff]
    %v2849 = vld [vmem:[%s5 + $0x140] sm:$0xff]
    %v2850 = vld [vmem:[%s5 + $0x148] sm:$0xff]
    %v2851 = vld [vmem:[%s5 + $0x150] sm:$0xff]
    %v2852 = vld [vmem:[%s5 + $0x158] sm:$0xff]
    %v2853 = vld [vmem:[%s5 + $0x160] sm:$0xff]
    %v2854 = vld [vmem:[%s5 + $0x168] sm:$0xff]
    %v2855 = vld [vmem:[%s5 + $0x170] sm:$0xff]
    %v2856 = vld [vmem:[%s5 + $0x178] sm:$0xff]
    %2858 = vset.pattern.permute.xlu0 0
    %2859 = vperm.xlu0 %2858, %v2809
    %v2860 = vpop.permute.xlu0 %2859
    %2863 = vset.pattern.permute.xlu0 0
    %2864 = vperm.xlu0 %2863, %v2810
    %v2865 = vpop.permute.xlu0 %2864
    %2868 = vset.pattern.permute.xlu0 0
    %2869 = vperm.xlu0 %2868, %v2811
    %v2870 = vpop.permute.xlu0 %2869
    %2873 = vset.pattern.permute.xlu0 0
    %2874 = vperm.xlu0 %2873, %v2812
    %v2875 = vpop.permute.xlu0 %2874
    %2878 = vset.pattern.permute.xlu0 0
    %2879 = vperm.xlu0 %2878, %v2813
    %v2880 = vpop.permute.xlu0 %2879
    %2883 = vset.pattern.permute.xlu0 0
    %2884 = vperm.xlu0 %2883, %v2814
    %v2885 = vpop.permute.xlu0 %2884
    %2888 = vset.pattern.permute.xlu0 0
    %2889 = vperm.xlu0 %2888, %v2815
    %v2890 = vpop.permute.xlu0 %2889
    %2893 = vset.pattern.permute.xlu0 0
    %2894 = vperm.xlu0 %2893, %v2816
    %v2895 = vpop.permute.xlu0 %2894
    %2898 = vset.pattern.permute.xlu0 0
    %2899 = vperm.xlu0 %2898, %v2817
    %v2900 = vpop.permute.xlu0 %2899
    %2903 = vset.pattern.permute.xlu0 0
    %2904 = vperm.xlu0 %2903, %v2818
    %v2905 = vpop.permute.xlu0 %2904
    %2908 = vset.pattern.permute.xlu0 0
    %2909 = vperm.xlu0 %2908, %v2819
    %v2910 = vpop.permute.xlu0 %2909
    %2913 = vset.pattern.permute.xlu0 0
    %2914 = vperm.xlu0 %2913, %v2820
    %v2915 = vpop.permute.xlu0 %2914
    %2918 = vset.pattern.permute.xlu0 0
    %2919 = vperm.xlu0 %2918, %v2821
    %v2920 = vpop.permute.xlu0 %2919
    %2923 = vset.pattern.permute.xlu0 0
    %2924 = vperm.xlu0 %2923, %v2822
    %v2925 = vpop.permute.xlu0 %2924
    %2928 = vset.pattern.permute.xlu0 0
    %2929 = vperm.xlu0 %2928, %v2823
    %v2930 = vpop.permute.xlu0 %2929
    %2933 = vset.pattern.permute.xlu0 0
    %2934 = vperm.xlu0 %2933, %v2824
    %v2935 = vpop.permute.xlu0 %2934
    %2938 = vset.pattern.permute.xlu0 0
    %2939 = vperm.xlu0 %2938, %v2825
    %v2940 = vpop.permute.xlu0 %2939
    %2943 = vset.pattern.permute.xlu0 0
    %2944 = vperm.xlu0 %2943, %v2826
    %v2945 = vpop.permute.xlu0 %2944
    %2948 = vset.pattern.permute.xlu0 0
    %2949 = vperm.xlu0 %2948, %v2827
    %v2950 = vpop.permute.xlu0 %2949
    %2953 = vset.pattern.permute.xlu0 0
    %2954 = vperm.xlu0 %2953, %v2828
    %v2955 = vpop.permute.xlu0 %2954
    %2958 = vset.pattern.permute.xlu0 0
    %2959 = vperm.xlu0 %2958, %v2829
    %v2960 = vpop.permute.xlu0 %2959
    %2963 = vset.pattern.permute.xlu0 0
    %2964 = vperm.xlu0 %2963, %v2830
    %v2965 = vpop.permute.xlu0 %2964
    %2968 = vset.pattern.permute.xlu0 0
    %2969 = vperm.xlu0 %2968, %v2831
    %v2970 = vpop.permute.xlu0 %2969
    %2973 = vset.pattern.permute.xlu0 0
    %2974 = vperm.xlu0 %2973, %v2832
    %v2975 = vpop.permute.xlu0 %2974
    %2978 = vset.pattern.permute.xlu0 0
    %2979 = vperm.xlu0 %2978, %v2833
    %v2980 = vpop.permute.xlu0 %2979
    %2983 = vset.pattern.permute.xlu0 0
    %2984 = vperm.xlu0 %2983, %v2834
    %v2985 = vpop.permute.xlu0 %2984
    %2988 = vset.pattern.permute.xlu0 0
    %2989 = vperm.xlu0 %2988, %v2835
    %v2990 = vpop.permute.xlu0 %2989
    %2993 = vset.pattern.permute.xlu0 0
    %2994 = vperm.xlu0 %2993, %v2836
    %v2995 = vpop.permute.xlu0 %2994
    %2998 = vset.pattern.permute.xlu0 0
    %2999 = vperm.xlu0 %2998, %v2837
    %v3000 = vpop.permute.xlu0 %2999
    %3003 = vset.pattern.permute.xlu0 0
    %3004 = vperm.xlu0 %3003, %v2838
    %v3005 = vpop.permute.xlu0 %3004
    %3008 = vset.pattern.permute.xlu0 0
    %3009 = vperm.xlu0 %3008, %v2839
    %v3010 = vpop.permute.xlu0 %3009
    %3013 = vset.pattern.permute.xlu0 0
    %3014 = vperm.xlu0 %3013, %v2840
    %v3015 = vpop.permute.xlu0 %3014
    %3018 = vset.pattern.permute.xlu0 0
    %3019 = vperm.xlu0 %3018, %v2841
    %v3020 = vpop.permute.xlu0 %3019
    %3023 = vset.pattern.permute.xlu0 0
    %3024 = vperm.xlu0 %3023, %v2842
    %v3025 = vpop.permute.xlu0 %3024
    %3028 = vset.pattern.permute.xlu0 0
    %3029 = vperm.xlu0 %3028, %v2843
    %v3030 = vpop.permute.xlu0 %3029
    %3033 = vset.pattern.permute.xlu0 0
    %3034 = vperm.xlu0 %3033, %v2844
    %v3035 = vpop.permute.xlu0 %3034
    %3038 = vset.pattern.permute.xlu0 0
    %3039 = vperm.xlu0 %3038, %v2845
    %v3040 = vpop.permute.xlu0 %3039
    %3043 = vset.pattern.permute.xlu0 0
    %3044 = vperm.xlu0 %3043, %v2846
    %v3045 = vpop.permute.xlu0 %3044
    %3048 = vset.pattern.permute.xlu0 0
    %3049 = vperm.xlu0 %3048, %v2847
    %v3050 = vpop.permute.xlu0 %3049
    %3053 = vset.pattern.permute.xlu0 0
    %3054 = vperm.xlu0 %3053, %v2848
    %v3055 = vpop.permute.xlu0 %3054
    %3058 = vset.pattern.permute.xlu0 0
    %3059 = vperm.xlu0 %3058, %v2849
    %v3060 = vpop.permute.xlu0 %3059
    %3063 = vset.pattern.permute.xlu0 0
    %3064 = vperm.xlu0 %3063, %v2850
    %v3065 = vpop.permute.xlu0 %3064
    %3068 = vset.pattern.permute.xlu0 0
    %3069 = vperm.xlu0 %3068, %v2851
    %v3070 = vpop.permute.xlu0 %3069
    %3073 = vset.pattern.permute.xlu0 0
    %3074 = vperm.xlu0 %3073, %v2852
    %v3075 = vpop.permute.xlu0 %3074
    %3078 = vset.pattern.permute.xlu0 0
    %3079 = vperm.xlu0 %3078, %v2853
    %v3080 = vpop.permute.xlu0 %3079
    %3083 = vset.pattern.permute.xlu0 0
    %3084 = vperm.xlu0 %3083, %v2854
    %v3085 = vpop.permute.xlu0 %3084
    %3088 = vset.pattern.permute.xlu0 0
    %3089 = vperm.xlu0 %3088, %v2855
    %v3090 = vpop.permute.xlu0 %3089
    %3093 = vset.pattern.permute.xlu0 0
    %3094 = vperm.xlu0 %3093, %v2856
    %v3095 = vpop.permute.xlu0 %3094
    %v3097 = vmul.f32 %v2713, %v2860
    %v3098 = vmul.f32 %v2714, %v2860
    %v3099 = vmul.f32 %v2715, %v2865
    %v3100 = vmul.f32 %v2716, %v2865
    %v3101 = vmul.f32 %v2717, %v2870
    %v3102 = vmul.f32 %v2718, %v2870
    %v3103 = vmul.f32 %v2719, %v2875
    %v3104 = vmul.f32 %v2720, %v2875
    %v3105 = vmul.f32 %v2721, %v2880
    %v3106 = vmul.f32 %v2722, %v2880
    %v3107 = vmul.f32 %v2723, %v2885
    %v3108 = vmul.f32 %v2724, %v2885
    %v3109 = vmul.f32 %v2725, %v2890
    %v3110 = vmul.f32 %v2726, %v2890
    %v3111 = vmul.f32 %v2727, %v2895
    %v3112 = vmul.f32 %v2728, %v2895
    %v3113 = vmul.f32 %v2729, %v2900
    %v3114 = vmul.f32 %v2730, %v2900
    %v3115 = vmul.f32 %v2731, %v2905
    %v3116 = vmul.f32 %v2732, %v2905
    %v3117 = vmul.f32 %v2733, %v2910
    %v3118 = vmul.f32 %v2734, %v2910
    %v3119 = vmul.f32 %v2735, %v2915
    %v3120 = vmul.f32 %v2736, %v2915
    %v3121 = vmul.f32 %v2737, %v2920
    %v3122 = vmul.f32 %v2738, %v2920
    %v3123 = vmul.f32 %v2739, %v2925
    %v3124 = vmul.f32 %v2740, %v2925
    %v3125 = vmul.f32 %v2741, %v2930
    %v3126 = vmul.f32 %v2742, %v2930
    %v3127 = vmul.f32 %v2743, %v2935
    %v3128 = vmul.f32 %v2744, %v2935
    %v3129 = vmul.f32 %v2745, %v2940
    %v3130 = vmul.f32 %v2746, %v2940
    %v3131 = vmul.f32 %v2747, %v2945
    %v3132 = vmul.f32 %v2748, %v2945
    %v3133 = vmul.f32 %v2749, %v2950
    %v3134 = vmul.f32 %v2750, %v2950
    %v3135 = vmul.f32 %v2751, %v2955
    %v3136 = vmul.f32 %v2752, %v2955
    %v3137 = vmul.f32 %v2753, %v2960
    %v3138 = vmul.f32 %v2754, %v2960
    %v3139 = vmul.f32 %v2755, %v2965
    %v3140 = vmul.f32 %v2756, %v2965
    %v3141 = vmul.f32 %v2757, %v2970
    %v3142 = vmul.f32 %v2758, %v2970
    %v3143 = vmul.f32 %v2759, %v2975
    %v3144 = vmul.f32 %v2760, %v2975
    %v3145 = vmul.f32 %v2761, %v2980
    %v3146 = vmul.f32 %v2762, %v2980
    %v3147 = vmul.f32 %v2763, %v2985
    %v3148 = vmul.f32 %v2764, %v2985
    %v3149 = vmul.f32 %v2765, %v2990
    %v3150 = vmul.f32 %v2766, %v2990
    %v3151 = vmul.f32 %v2767, %v2995
    %v3152 = vmul.f32 %v2768, %v2995
    %v3153 = vmul.f32 %v2769, %v3000
    %v3154 = vmul.f32 %v2770, %v3000
    %v3155 = vmul.f32 %v2771, %v3005
    %v3156 = vmul.f32 %v2772, %v3005
    %v3157 = vmul.f32 %v2773, %v3010
    %v3158 = vmul.f32 %v2774, %v3010
    %v3159 = vmul.f32 %v2775, %v3015
    %v3160 = vmul.f32 %v2776, %v3015
    %v3161 = vmul.f32 %v2777, %v3020
    %v3162 = vmul.f32 %v2778, %v3020
    %v3163 = vmul.f32 %v2779, %v3025
    %v3164 = vmul.f32 %v2780, %v3025
    %v3165 = vmul.f32 %v2781, %v3030
    %v3166 = vmul.f32 %v2782, %v3030
    %v3167 = vmul.f32 %v2783, %v3035
    %v3168 = vmul.f32 %v2784, %v3035
    %v3169 = vmul.f32 %v2785, %v3040
    %v3170 = vmul.f32 %v2786, %v3040
    %v3171 = vmul.f32 %v2787, %v3045
    %v3172 = vmul.f32 %v2788, %v3045
    %v3173 = vmul.f32 %v2789, %v3050
    %v3174 = vmul.f32 %v2790, %v3050
    %v3175 = vmul.f32 %v2791, %v3055
    %v3176 = vmul.f32 %v2792, %v3055
    %v3177 = vmul.f32 %v2793, %v3060
    %v3178 = vmul.f32 %v2794, %v3060
    %v3179 = vmul.f32 %v2795, %v3065
    %v3180 = vmul.f32 %v2796, %v3065
    %v3181 = vmul.f32 %v2797, %v3070
    %v3182 = vmul.f32 %v2798, %v3070
    %v3183 = vmul.f32 %v2799, %v3075
    %v3184 = vmul.f32 %v2800, %v3075
    %v3185 = vmul.f32 %v2801, %v3080
    %v3186 = vmul.f32 %v2802, %v3080
    %v3187 = vmul.f32 %v2803, %v3085
    %v3188 = vmul.f32 %v2804, %v3085
    %v3189 = vmul.f32 %v2805, %v3090
    %v3190 = vmul.f32 %v2806, %v3090
    %v3191 = vmul.f32 %v2807, %v3095
    %v3192 = vmul.f32 %v2808, %v3095
    %v3193 = vadd.f32 %v3097, %v3099
    %v3194 = vadd.f32 %v3193, %v3101
    %v3195 = vadd.f32 %v3194, %v3103
    %v3196 = vadd.f32 %v3195, %v3105
    %v3197 = vadd.f32 %v3196, %v3107
    %v3198 = vadd.f32 %v3197, %v3109
    %v3199 = vadd.f32 %v3198, %v3111
    %v3200 = vadd.f32 %v3199, %v3113
    %v3201 = vadd.f32 %v3200, %v3115
    %v3202 = vadd.f32 %v3201, %v3117
    %v3203 = vadd.f32 %v3202, %v3119
    %v3204 = vadd.f32 %v3203, %v3121
    %v3205 = vadd.f32 %v3204, %v3123
    %v3206 = vadd.f32 %v3205, %v3125
    %v3207 = vadd.f32 %v3206, %v3127
    %v3208 = vadd.f32 %v3207, %v3129
    %v3209 = vadd.f32 %v3208, %v3131
    %v3210 = vadd.f32 %v3209, %v3133
    %v3211 = vadd.f32 %v3210, %v3135
    %v3212 = vadd.f32 %v3211, %v3137
    %v3213 = vadd.f32 %v3212, %v3139
    %v3214 = vadd.f32 %v3213, %v3141
    %v3215 = vadd.f32 %v3214, %v3143
    %v3216 = vadd.f32 %v3215, %v3145
    %v3217 = vadd.f32 %v3216, %v3147
    %v3218 = vadd.f32 %v3217, %v3149
    %v3219 = vadd.f32 %v3218, %v3151
    %v3220 = vadd.f32 %v3219, %v3153
    %v3221 = vadd.f32 %v3220, %v3155
    %v3222 = vadd.f32 %v3221, %v3157
    %v3223 = vadd.f32 %v3222, %v3159
    %v3224 = vadd.f32 %v3223, %v3161
    %v3225 = vadd.f32 %v3224, %v3163
    %v3226 = vadd.f32 %v3225, %v3165
    %v3227 = vadd.f32 %v3226, %v3167
    %v3228 = vadd.f32 %v3227, %v3169
    %v3229 = vadd.f32 %v3228, %v3171
    %v3230 = vadd.f32 %v3229, %v3173
    %v3231 = vadd.f32 %v3230, %v3175
    %v3232 = vadd.f32 %v3231, %v3177
    %v3233 = vadd.f32 %v3232, %v3179
    %v3234 = vadd.f32 %v3233, %v3181
    %v3235 = vadd.f32 %v3234, %v3183
    %v3236 = vadd.f32 %v3235, %v3185
    %v3237 = vadd.f32 %v3236, %v3187
    %v3238 = vadd.f32 %v3237, %v3189
    %v3239 = vadd.f32 %v3238, %v3191
    %v3240 = vrot.slane %v3239, 4
    %v3241 = vadd.f32 %v3239, %v3240
    %v3242 = vrot.slane %v3241, 2
    %v3243 = vadd.f32 %v3241, %v3242
    %v3244 = vrot.slane %v3243, 1
    %v3245 = vadd.f32 %v3243, %v3244
    %v3246 = vadd.f32 %v3098, %v3100
    %v3247 = vadd.f32 %v3246, %v3102
    %v3248 = vadd.f32 %v3247, %v3104
    %v3249 = vadd.f32 %v3248, %v3106
    %v3250 = vadd.f32 %v3249, %v3108
    %v3251 = vadd.f32 %v3250, %v3110
    %v3252 = vadd.f32 %v3251, %v3112
    %v3253 = vadd.f32 %v3252, %v3114
    %v3254 = vadd.f32 %v3253, %v3116
    %v3255 = vadd.f32 %v3254, %v3118
    %v3256 = vadd.f32 %v3255, %v3120
    %v3257 = vadd.f32 %v3256, %v3122
    %v3258 = vadd.f32 %v3257, %v3124
    %v3259 = vadd.f32 %v3258, %v3126
    %v3260 = vadd.f32 %v3259, %v3128
    %v3261 = vadd.f32 %v3260, %v3130
    %v3262 = vadd.f32 %v3261, %v3132
    %v3263 = vadd.f32 %v3262, %v3134
    %v3264 = vadd.f32 %v3263, %v3136
    %v3265 = vadd.f32 %v3264, %v3138
    %v3266 = vadd.f32 %v3265, %v3140
    %v3267 = vadd.f32 %v3266, %v3142
    %v3268 = vadd.f32 %v3267, %v3144
    %v3269 = vadd.f32 %v3268, %v3146
    %v3270 = vadd.f32 %v3269, %v3148
    %v3271 = vadd.f32 %v3270, %v3150
    %v3272 = vadd.f32 %v3271, %v3152
    %v3273 = vadd.f32 %v3272, %v3154
    %v3274 = vadd.f32 %v3273, %v3156
    %v3275 = vadd.f32 %v3274, %v3158
    %v3276 = vadd.f32 %v3275, %v3160
    %v3277 = vadd.f32 %v3276, %v3162
    %v3278 = vadd.f32 %v3277, %v3164
    %v3279 = vadd.f32 %v3278, %v3166
    %v3280 = vadd.f32 %v3279, %v3168
    %v3281 = vadd.f32 %v3280, %v3170
    %v3282 = vadd.f32 %v3281, %v3172
    %v3283 = vadd.f32 %v3282, %v3174
    %v3284 = vadd.f32 %v3283, %v3176
    %v3285 = vadd.f32 %v3284, %v3178
    %v3286 = vadd.f32 %v3285, %v3180
    %v3287 = vadd.f32 %v3286, %v3182
    %v3288 = vadd.f32 %v3287, %v3184
    %v3289 = vadd.f32 %v3288, %v3186
    %v3290 = vadd.f32 %v3289, %v3188
    %v3291 = vadd.f32 %v3290, %v3190
    %v3292 = vadd.f32 %v3291, %v3192
    %v3293 = vrot.slane %v3292, 4
    %v3294 = vadd.f32 %v3292, %v3293
    %v3295 = vrot.slane %v3294, 2
    %v3296 = vadd.f32 %v3294, %v3295
    %v3297 = vrot.slane %v3296, 1
    %v3298 = vadd.f32 %v3296, %v3297
    %s3299 = sld [smem:[#allocation2]]
    %v3300 = vstv %s3299
    %v3301 = vadd.f32 %v3245, %v3300
    %v3302 = vadd.f32 %v3298, %v3300
    %v3303 = vtanh.pop %v3301
    %v3304 = vtanh.pop %v3302
    %v3307 = vcombine.low %v3303, %v3304
    %v3309 = vunpack.c.l.s4 1966171168
    %v3310 = vunpack.c.0.s8 %v3309
    %v3311 = vlaneseq
    %v3312 = vshrl.u32 %v3311, 7
    %v3313 = vsub.s32 %v3310, %v3312
    %v3314 = vrot.slane %v3307, %v3313
    %v3316 = vunpack.c.l.s4 1966171168
    %v3317 = vunpack.c.0.s8 %v3316
    %v3318 = vlaneseq
    %v3319 = vshrl.u32 %v3318, 7
    %v3320 = vsub.s32 %v3317, %v3319
    %v3321 = vrot.slane %v3314, %v3320
    %v3323 = vlaneseq
    %vm3324 = vcmp.ge.s32.totalorder %v3323, 0
    %vm3325 = vcmp.lt.s32.totalorder %v3323, 256
    %vm3326 = vmand %vm3324, %vm3325
    %3327 = vst.msk [vmem:[#allocation3] sm:$0x3] %vm3326, %v3321
    // Predicated region
    $region30: #{tpu_custom_call.1} parent=1 // pred_check
      _
    $region31: #{tpu_custom_call.1} parent=1 // pred_check_branch
      %3329 = sbr.rel (0) target = $region33
    $region32: #{tpu_custom_call.1} parent=1 // pred_region
      %s3331 = ssub.s32 32, 32
      %3332 = vsyncadd [#allocation4], %s3331
      %s3334 = sshll.u32 [#allocation3], 4
      %s3335 = int_to_ptr.vmem [resolvable:$true] %s3334
      %3337 = dma.vmem_to_hbm [thread:$0]  %s3335, 32, %s7, [#allocation4]
    $region33: #{tpu_custom_call.1} parent=1 // pred_fallthru
      _
    // Predicated region
    $region34: #{tpu_custom_call.1} parent=1 // pred_check
      _
    $region35: #{tpu_custom_call.1} parent=1 // pred_check_branch
      %3339 = sbr.rel (0) target = $region37
    $region36: #{tpu_custom_call.1} parent=1 // pred_region
      %3340 = dma.done [#allocation4], 32
    $region37: #{tpu_custom_call.1} parent=1 // pred_fallthru
      _
    %3341 = vsyncpa [#allocation4], 1

</llo_original>
